<compile_context>
chip_gen: v6e
topology: v6e:2x2x1
jax: 0.10.0
libtpu: 0.0.40
codegen_flags: <defaults>
</compile_context>

<pallas_src>
import jax
import jax.numpy as jnp
from jax.experimental import pallas as pl
from jax.experimental.pallas import tpu as pltpu


LANE = 128      # lane width: action dim padded to this for lane-dense stores
SUBLANE = 8     # sublane granule for the batch tile


def _round_up(x, m):
    return ((x + m - 1) // m) * m


def _target_grid_steps(batch):
    """1 grid step on single-TC chips (v5e/v6e); >=2 on v7x so the 'parallel'
    batch axis actually shards across its two TensorCores."""
    if batch < 2 * SUBLANE:
        return 1
    try:
        kind = jax.devices()[0].device_kind.lower()
    except Exception:
        return 1
    return 2 if "v7" in kind else 1


def dqn_kernel(x_ref, w1_ref, b1_ref, w2_ref, b2_ref, w3_ref, b3_ref, o_ref):
    x = x_ref[...]          # (tb, S) float32
    w1 = w1_ref[...]        # (S, H)  float32
    s = x_ref.shape[1]

    # ---- Layer 1 + ReLU ----
    if s <= 16:
        # Tiny contraction dim (CartPole: S=4): unrolled outer-product accumulation
        # on the VPU beats an MXU push that would be >95% padding.
        h1 = b1_ref[...] + x[:, 0:1] * w1[0:1, :]
        for k in range(1, s):
            h1 = h1 + x[:, k:k + 1] * w1[k:k + 1, :]
    else:
        h1 = jnp.dot(x, w1, preferred_element_type=jnp.float32) + b1_ref[...]
    h1 = jnp.maximum(h1, 0.0)

    # ---- Layer 2 + ReLU (bf16 MXU, f32 accumulate, f32 epilogue) ----
    h2 = jnp.dot(h1.astype(jnp.bfloat16), w2_ref[...],
                 preferred_element_type=jnp.float32)
    h2 = jnp.maximum(h2 + b2_ref[...], 0.0)

    # ---- Layer 3 (no activation) -> lane-dense (tb, 128) slab, bf16 store ----
    o = jnp.dot(h2.astype(jnp.bfloat16), w3_ref[...],
                preferred_element_type=jnp.float32)
    o_ref[...] = (o + b3_ref[...]).astype(o_ref.dtype)


def dqn_forward(x, params, action_size, *, block_b=1024):
    """x: (B, state_size) float32. params from init_dqn_params."""
    w1, b1 = params["w1"], params["b1"]
    w2, b2 = params["w2"], params["b2"]
    w3, b3 = params["w3"], params["b3"]

    B, S = x.shape
    assert w1.shape[0] == S, "state_size mismatch with params"
    H = w1.shape[1]
    A_pad = w3.shape[1]            # action dim padded to the lane width (128)

    # Batch tiling: as few, as large grid steps as possible (no wrapper padding;
    # Pallas masks the ragged last block, and garbage rows never leave VMEM->slice).
    steps = _target_grid_steps(B)
    tb = max(SUBLANE, min(block_b, _round_up(pl.cdiv(B, steps), SUBLANE)))
    grid = (pl.cdiv(B, tb),)

    out_dtype = jnp.bfloat16       # halves writeback of the 128-wide output slab
    tile_bytes = 2 * tb * (S * 4 + A_pad * jnp.dtype(out_dtype).itemsize)
    weight_bytes = S * H * 4 + (H * H + H * A_pad) * 2 + (2 * H + A_pad) * 4
    vmem_limit = (48 * 1024 * 1024
                  if tile_bytes + weight_bytes > 24 * 1024 * 1024 else None)

    def call(buffered_weights):
        def const(shape):
            # Constant index_map -> VMEM-resident across grid steps.
            if buffered_weights:
                return pl.BlockSpec(shape, lambda i: (0, 0),
                                    pipeline_mode=pl.Buffered(1))
            return pl.BlockSpec(shape, lambda i: (0, 0))

        return pl.pallas_call(
            dqn_kernel,
            out_shape=jax.ShapeDtypeStruct((B, A_pad), out_dtype),
            grid_spec=pltpu.PrefetchScalarGridSpec(
                num_scalar_prefetch=0,
                grid=grid,
                in_specs=[
                    pl.BlockSpec((tb, S), lambda i: (i, 0)),   # x (batch-tiled)
                    const((S, H)),                             # w1 (f32, resident)
                    const((1, H)),                             # b1
                    const((H, H)),                             # w2 (bf16, resident)
                    const((1, H)),                             # b2
                    const((H, A_pad)),                         # w3 (bf16, lane-padded)
                    const((1, A_pad)),                         # b3
                ],
                out_specs=pl.BlockSpec((tb, A_pad), lambda i: (i, 0)),
            ),
            compiler_params=pltpu.CompilerParams(
                dimension_semantics=("parallel",),   # batch axis -> TCs on v7x
                vmem_limit_bytes=vmem_limit),
        )(x, w1, b1, w2, b2, w3, b3)

    try:
        out = call(True)       # single-buffered invariant weights/biases
    except Exception:
        out = call(False)      # fall back to default double-buffering

    # TODO(synk): for pure greedy-action inference, fuse argmax into the kernel
    # so only (B,) leaves VMEM instead of the (B, 128) slab.
    return out[:, :action_size].astype(jnp.float32)


def init_dqn_params(key, state_size, action_size, hidden=128):
    """PyTorch nn.Linear-style init (uniform +-1/sqrt(fan_in)), weights stored (in, out).
    Layer-1 weight kept f32 (tiny, VPU path); layers 2/3 in bf16 for the MXU.
    w3/b3 zero-padded to 128 output columns for lane-dense stores."""
    def linear(k, fan_in, fan_out):
        kw, kb = jax.random.split(k)
        bound = 1.0 / float(fan_in) ** 0.5
        w = jax.random.uniform(kw, (fan_in, fan_out), jnp.float32, -bound, bound)
        b = jax.random.uniform(kb, (1, fan_out), jnp.float32, -bound, bound)
        return w, b

    k1, k2, k3 = jax.random.split(key, 3)
    w1, b1 = linear(k1, state_size, hidden)
    w2, b2 = linear(k2, hidden, hidden)
    w3, b3 = linear(k3, hidden, action_size)

    a_pad = _round_up(action_size, LANE)
    w3 = jnp.pad(w3, ((0, 0), (0, a_pad - action_size)))
    b3 = jnp.pad(b3, ((0, 0), (0, a_pad - action_size)))

    return {
        "w1": w1, "b1": b1,
        "w2": w2.astype(jnp.bfloat16), "b2": b2,
        "w3": w3.astype(jnp.bfloat16), "b3": b3,
    }


def ref_forward(x, params, action_size):
    """Pure-JAX reference following the same numeric recipe as the kernel."""
    h1 = jnp.maximum(
        jnp.dot(x, params["w1"], preferred_element_type=jnp.float32)
        + params["b1"], 0.0)
    h2 = jnp.maximum(
        jnp.dot(h1.astype(jnp.bfloat16), params["w2"],
                preferred_element_type=jnp.float32) + params["b2"], 0.0)
    o = jnp.dot(h2.astype(jnp.bfloat16), params["w3"],
                preferred_element_type=jnp.float32) + params["b3"]
    o = o.astype(jnp.bfloat16).astype(jnp.float32)   # match the kernel's bf16 store
    return o[:, :action_size]


if __name__ == "__main__":
    key = jax.random.PRNGKey(0)
    k_x, k_x2, k_p = jax.random.split(key, 3)

    # CartPole-v1: observation dim = 4, actions = 2.
    state_size, action_size, hidden = 4, 2, 128
    params = init_dqn_params(k_p, state_size, action_size, hidden=hidden)

    # Main check: batch of 256 (one grid step on v5e/v6e, two on v7x).
    x = jax.random.normal(k_x, (256, state_size), dtype=jnp.float32)
    out = jax.block_until_ready(dqn_forward(x, params, action_size))
    ref = ref_forward(x, params, action_size)
    assert out.shape == (256, action_size)
    assert jnp.allclose(out, ref, atol=2e-2, rtol=2e-2), \
        float(jnp.max(jnp.abs(out - ref)))

    # Ragged-batch check: no wrapper padding; Pallas masks the partial block.
    x2 = jax.random.normal(k_x2, (50, state_size), dtype=jnp.float32)
    out2 = jax.block_until_ready(dqn_forward(x2, params, action_size))
    ref2 = ref_forward(x2, params, action_size)
    assert out2.shape == (50, action_size)
    assert jnp.allclose(out2, ref2, atol=2e-2, rtol=2e-2), \
        float(jnp.max(jnp.abs(out2 - ref2)))

    print("KERNEL_OK")
</pallas_src>

<mosaic_0001>
module attributes {stable_mosaic.version = 11 : i64} {
  func.func @dqn_kernel(%arg0: i32, %arg1: memref<256x4xf32, #tpu.memory_space<vmem>>, %arg2: memref<4x128xf32, #tpu.memory_space<vmem>>, %arg3: memref<1x128xf32, #tpu.memory_space<vmem>>, %arg4: memref<128x128xbf16, #tpu.memory_space<vmem>>, %arg5: memref<1x128xf32, #tpu.memory_space<vmem>>, %arg6: memref<128x128xbf16, #tpu.memory_space<vmem>>, %arg7: memref<1x128xf32, #tpu.memory_space<vmem>>, %arg8: memref<256x128xbf16, #tpu.memory_space<vmem>>) attributes {dimension_semantics = [#tpu.dimension_semantics<parallel>], iteration_bounds = array<i64: 1>, scalar_prefetch = 0 : i64, scratch_operands = 0 : i64, tpu.core_type = #tpu.core_type<tc>, window_params = [{transform_indices = @transform_0, window_bounds = array<i64: 256, 4>}, {pipeline_mode = #tpu.pipeline_mode<synchronous>, transform_indices = @transform_1, window_bounds = array<i64: 4, 128>}, {pipeline_mode = #tpu.pipeline_mode<synchronous>, transform_indices = @transform_2, window_bounds = array<i64: 1, 128>}, {pipeline_mode = #tpu.pipeline_mode<synchronous>, transform_indices = @transform_3, window_bounds = array<i64: 128, 128>}, {pipeline_mode = #tpu.pipeline_mode<synchronous>, transform_indices = @transform_4, window_bounds = array<i64: 1, 128>}, {pipeline_mode = #tpu.pipeline_mode<synchronous>, transform_indices = @transform_5, window_bounds = array<i64: 128, 128>}, {pipeline_mode = #tpu.pipeline_mode<synchronous>, transform_indices = @transform_6, window_bounds = array<i64: 1, 128>}, {transform_indices = @transform_7, window_bounds = array<i64: 256, 128>}]} {
    %c0 = arith.constant 0 : index
    %c0_0 = arith.constant 0 : index
    %0 = vector.load %arg1[%c0, %c0_0] : memref<256x4xf32, #tpu.memory_space<vmem>>, vector<256x4xf32>
    %c0_1 = arith.constant 0 : index
    %c0_2 = arith.constant 0 : index
    %1 = vector.load %arg2[%c0_1, %c0_2] : memref<4x128xf32, #tpu.memory_space<vmem>>, vector<4x128xf32>
    %c0_3 = arith.constant 0 : index
    %c0_4 = arith.constant 0 : index
    %2 = vector.load %arg3[%c0_3, %c0_4] : memref<1x128xf32, #tpu.memory_space<vmem>>, vector<1x128xf32>
    %3 = vector.extract_strided_slice %0 {offsets = [0, 0], sizes = [256, 1], strides = [1, 1]} : vector<256x4xf32> to vector<256x1xf32>
    %4 = vector.extract_strided_slice %1 {offsets = [0, 0], sizes = [1, 128], strides = [1, 1]} : vector<4x128xf32> to vector<1x128xf32>
    %5 = vector.broadcast %3 : vector<256x1xf32> to vector<256x128xf32>
    %6 = vector.broadcast %4 : vector<1x128xf32> to vector<256x128xf32>
    %7 = arith.mulf %5, %6 : vector<256x128xf32>
    %8 = vector.broadcast %2 : vector<1x128xf32> to vector<256x128xf32>
    %9 = arith.addf %8, %7 : vector<256x128xf32>
    %10 = vector.extract_strided_slice %0 {offsets = [0, 1], sizes = [256, 1], strides = [1, 1]} : vector<256x4xf32> to vector<256x1xf32>
    %11 = vector.extract_strided_slice %1 {offsets = [1, 0], sizes = [1, 128], strides = [1, 1]} : vector<4x128xf32> to vector<1x128xf32>
    %12 = vector.broadcast %10 : vector<256x1xf32> to vector<256x128xf32>
    %13 = vector.broadcast %11 : vector<1x128xf32> to vector<256x128xf32>
    %14 = arith.mulf %12, %13 : vector<256x128xf32>
    %15 = arith.addf %9, %14 : vector<256x128xf32>
    %16 = vector.extract_strided_slice %0 {offsets = [0, 2], sizes = [256, 1], strides = [1, 1]} : vector<256x4xf32> to vector<256x1xf32>
    %17 = vector.extract_strided_slice %1 {offsets = [2, 0], sizes = [1, 128], strides = [1, 1]} : vector<4x128xf32> to vector<1x128xf32>
    %18 = vector.broadcast %16 : vector<256x1xf32> to vector<256x128xf32>
    %19 = vector.broadcast %17 : vector<1x128xf32> to vector<256x128xf32>
    %20 = arith.mulf %18, %19 : vector<256x128xf32>
    %21 = arith.addf %15, %20 : vector<256x128xf32>
    %22 = vector.extract_strided_slice %0 {offsets = [0, 3], sizes = [256, 1], strides = [1, 1]} : vector<256x4xf32> to vector<256x1xf32>
    %23 = vector.extract_strided_slice %1 {offsets = [3, 0], sizes = [1, 128], strides = [1, 1]} : vector<4x128xf32> to vector<1x128xf32>
    %24 = vector.broadcast %22 : vector<256x1xf32> to vector<256x128xf32>
    %25 = vector.broadcast %23 : vector<1x128xf32> to vector<256x128xf32>
    %26 = arith.mulf %24, %25 : vector<256x128xf32>
    %27 = arith.addf %21, %26 : vector<256x128xf32>
    %cst = arith.constant 0.000000e+00 : f32
    %28 = vector.broadcast %cst : f32 to vector<256x128xf32>
    %29 = arith.maximumf %27, %28 : vector<256x128xf32>
    %30 = arith.truncf %29 : vector<256x128xf32> to vector<256x128xbf16>
    %c0_5 = arith.constant 0 : index
    %c0_6 = arith.constant 0 : index
    %31 = vector.load %arg4[%c0_5, %c0_6] : memref<128x128xbf16, #tpu.memory_space<vmem>>, vector<128x128xbf16>
    %cst_7 = arith.constant dense<0.000000e+00> : vector<256x128xf32>
    %32 = tpu.matmul %30, %31, %cst_7 {dimension_numbers = #tpu.dot_dimension_numbers<[1], [0], [0], [1], [0, 0, 1, 1], [], []>} : vector<256x128xbf16>, vector<128x128xbf16>, vector<256x128xf32> -> vector<256x128xf32>
    %c0_8 = arith.constant 0 : index
    %c0_9 = arith.constant 0 : index
    %33 = vector.load %arg5[%c0_8, %c0_9] : memref<1x128xf32, #tpu.memory_space<vmem>>, vector<1x128xf32>
    %34 = vector.broadcast %33 : vector<1x128xf32> to vector<256x128xf32>
    %35 = arith.addf %32, %34 : vector<256x128xf32>
    %cst_10 = arith.constant 0.000000e+00 : f32
    %36 = vector.broadcast %cst_10 : f32 to vector<256x128xf32>
    %37 = arith.maximumf %35, %36 : vector<256x128xf32>
    %38 = arith.truncf %37 : vector<256x128xf32> to vector<256x128xbf16>
    %c0_11 = arith.constant 0 : index
    %c0_12 = arith.constant 0 : index
    %39 = vector.load %arg6[%c0_11, %c0_12] : memref<128x128xbf16, #tpu.memory_space<vmem>>, vector<128x128xbf16>
    %cst_13 = arith.constant dense<0.000000e+00> : vector<256x128xf32>
    %40 = tpu.matmul %38, %39, %cst_13 {dimension_numbers = #tpu.dot_dimension_numbers<[1], [0], [0], [1], [0, 0, 1, 1], [], []>} : vector<256x128xbf16>, vector<128x128xbf16>, vector<256x128xf32> -> vector<256x128xf32>
    %c0_14 = arith.constant 0 : index
    %c0_15 = arith.constant 0 : index
    %41 = vector.load %arg7[%c0_14, %c0_15] : memref<1x128xf32, #tpu.memory_space<vmem>>, vector<1x128xf32>
    %42 = vector.broadcast %41 : vector<1x128xf32> to vector<256x128xf32>
    %43 = arith.addf %40, %42 : vector<256x128xf32>
    %44 = arith.truncf %43 : vector<256x128xf32> to vector<256x128xbf16>
    %c0_16 = arith.constant 0 : index
    %c0_17 = arith.constant 0 : index
    %45 = vector.load %arg8[%c0_16, %c0_17] : memref<256x128xbf16, #tpu.memory_space<vmem>>, vector<256x128xbf16>
    tpu.vector_store %arg8[%c0_16, %c0_17], %44 {strides = array<i32>} : memref<256x128xbf16, #tpu.memory_space<vmem>>, vector<256x128xbf16>,
    return
  }
  func.func @transform_0(%arg0: i32) -> (i32, i32) {
    %c0_i32 = arith.constant 0 : i32
    %c0_i32_0 = arith.constant 0 : i32
    return %arg0, %c0_i32 : i32, i32
  }
  func.func @transform_1(%arg0: i32) -> (i32, i32) {
    %c0_i32 = arith.constant 0 : i32
    %c0_i32_0 = arith.constant 0 : i32
    %c0_i32_1 = arith.constant 0 : i32
    return %c0_i32, %c0_i32_0 : i32, i32
  }
  func.func @transform_2(%arg0: i32) -> (i32, i32) {
    %c0_i32 = arith.constant 0 : i32
    %c0_i32_0 = arith.constant 0 : i32
    %c0_i32_1 = arith.constant 0 : i32
    return %c0_i32, %c0_i32_0 : i32, i32
  }
  func.func @transform_3(%arg0: i32) -> (i32, i32) {
    %c0_i32 = arith.constant 0 : i32
    %c0_i32_0 = arith.constant 0 : i32
    %c0_i32_1 = arith.constant 0 : i32
    return %c0_i32, %c0_i32_0 : i32, i32
  }
  func.func @transform_4(%arg0: i32) -> (i32, i32) {
    %c0_i32 = arith.constant 0 : i32
    %c0_i32_0 = arith.constant 0 : i32
    %c0_i32_1 = arith.constant 0 : i32
    return %c0_i32, %c0_i32_0 : i32, i32
  }
  func.func @transform_5(%arg0: i32) -> (i32, i32) {
    %c0_i32 = arith.constant 0 : i32
    %c0_i32_0 = arith.constant 0 : i32
    %c0_i32_1 = arith.constant 0 : i32
    return %c0_i32, %c0_i32_0 : i32, i32
  }
  func.func @transform_6(%arg0: i32) -> (i32, i32) {
    %c0_i32 = arith.constant 0 : i32
    %c0_i32_0 = arith.constant 0 : i32
    %c0_i32_1 = arith.constant 0 : i32
    return %c0_i32, %c0_i32_0 : i32, i32
  }
  func.func @transform_7(%arg0: i32) -> (i32, i32) {
    %c0_i32 = arith.constant 0 : i32
    %c0_i32_0 = arith.constant 0 : i32
    return %arg0, %c0_i32 : i32, i32
  }
}

module attributes {stable_mosaic.version = 11 : i64} {
  func.func @dqn_kernel(%arg0: i32, %arg1: memref<256x4xf32, #tpu.memory_space<vmem>>, %arg2: memref<4x128xf32, #tpu.memory_space<vmem>>, %arg3: memref<1x128xf32, #tpu.memory_space<vmem>>, %arg4: memref<128x128xbf16, #tpu.memory_space<vmem>>, %arg5: memref<1x128xf32, #tpu.memory_space<vmem>>, %arg6: memref<128x128xbf16, #tpu.memory_space<vmem>>, %arg7: memref<1x128xf32, #tpu.memory_space<vmem>>, %arg8: memref<256x128xbf16, #tpu.memory_space<vmem>>) attributes {dimension_semantics = [#tpu.dimension_semantics<parallel>], iteration_bounds = array<i64: 1>, scalar_prefetch = 0 : i64, scratch_operands = 0 : i64, tpu.core_type = #tpu.core_type<tc>, window_params = [{transform_indices = @transform_0, window_bounds = array<i64: 256, 4>}, {pipeline_mode = #tpu.pipeline_mode<synchronous>, transform_indices = @transform_1, window_bounds = array<i64: 4, 128>}, {pipeline_mode = #tpu.pipeline_mode<synchronous>, transform_indices = @transform_2, window_bounds = array<i64: 1, 128>}, {pipeline_mode = #tpu.pipeline_mode<synchronous>, transform_indices = @transform_3, window_bounds = array<i64: 128, 128>}, {pipeline_mode = #tpu.pipeline_mode<synchronous>, transform_indices = @transform_4, window_bounds = array<i64: 1, 128>}, {pipeline_mode = #tpu.pipeline_mode<synchronous>, transform_indices = @transform_5, window_bounds = array<i64: 128, 128>}, {pipeline_mode = #tpu.pipeline_mode<synchronous>, transform_indices = @transform_6, window_bounds = array<i64: 1, 128>}, {transform_indices = @transform_7, window_bounds = array<i64: 256, 128>}]} {
    %c0 = arith.constant 0 : index
    %c0_0 = arith.constant 0 : index
    %0 = vector.load %arg1[%c0, %c0_0] : memref<256x4xf32, #tpu.memory_space<vmem>>, vector<256x4xf32>
    %c0_1 = arith.constant 0 : index
    %c0_2 = arith.constant 0 : index
    %1 = vector.load %arg2[%c0_1, %c0_2] : memref<4x128xf32, #tpu.memory_space<vmem>>, vector<4x128xf32>
    %c0_3 = arith.constant 0 : index
    %c0_4 = arith.constant 0 : index
    %2 = vector.load %arg3[%c0_3, %c0_4] : memref<1x128xf32, #tpu.memory_space<vmem>>, vector<1x128xf32>
    %3 = vector.extract_strided_slice %0 {offsets = [0, 0], sizes = [256, 1], strides = [1, 1]} : vector<256x4xf32> to vector<256x1xf32>
    %4 = vector.extract_strided_slice %1 {offsets = [0, 0], sizes = [1, 128], strides = [1, 1]} : vector<4x128xf32> to vector<1x128xf32>
    %5 = vector.broadcast %3 : vector<256x1xf32> to vector<256x128xf32>
    %6 = vector.broadcast %4 : vector<1x128xf32> to vector<256x128xf32>
    %7 = arith.mulf %5, %6 : vector<256x128xf32>
    %8 = vector.broadcast %2 : vector<1x128xf32> to vector<256x128xf32>
    %9 = arith.addf %8, %7 : vector<256x128xf32>
    %10 = vector.extract_strided_slice %0 {offsets = [0, 1], sizes = [256, 1], strides = [1, 1]} : vector<256x4xf32> to vector<256x1xf32>
    %11 = vector.extract_strided_slice %1 {offsets = [1, 0], sizes = [1, 128], strides = [1, 1]} : vector<4x128xf32> to vector<1x128xf32>
    %12 = vector.broadcast %10 : vector<256x1xf32> to vector<256x128xf32>
    %13 = vector.broadcast %11 : vector<1x128xf32> to vector<256x128xf32>
    %14 = arith.mulf %12, %13 : vector<256x128xf32>
    %15 = arith.addf %9, %14 : vector<256x128xf32>
    %16 = vector.extract_strided_slice %0 {offsets = [0, 2], sizes = [256, 1], strides = [1, 1]} : vector<256x4xf32> to vector<256x1xf32>
    %17 = vector.extract_strided_slice %1 {offsets = [2, 0], sizes = [1, 128], strides = [1, 1]} : vector<4x128xf32> to vector<1x128xf32>
    %18 = vector.broadcast %16 : vector<256x1xf32> to vector<256x128xf32>
    %19 = vector.broadcast %17 : vector<1x128xf32> to vector<256x128xf32>
    %20 = arith.mulf %18, %19 : vector<256x128xf32>
    %21 = arith.addf %15, %20 : vector<256x128xf32>
    %22 = vector.extract_strided_slice %0 {offsets = [0, 3], sizes = [256, 1], strides = [1, 1]} : vector<256x4xf32> to vector<256x1xf32>
    %23 = vector.extract_strided_slice %1 {offsets = [3, 0], sizes = [1, 128], strides = [1, 1]} : vector<4x128xf32> to vector<1x128xf32>
    %24 = vector.broadcast %22 : vector<256x1xf32> to vector<256x128xf32>
    %25 = vector.broadcast %23 : vector<1x128xf32> to vector<256x128xf32>
    %26 = arith.mulf %24, %25 : vector<256x128xf32>
    %27 = arith.addf %21, %26 : vector<256x128xf32>
    %cst = arith.constant 0.000000e+00 : f32
    %28 = vector.broadcast %cst : f32 to vector<256x128xf32>
    %29 = arith.maximumf %27, %28 : vector<256x128xf32>
    %30 = arith.truncf %29 : vector<256x128xf32> to vector<256x128xbf16>
    %c0_5 = arith.constant 0 : index
    %c0_6 = arith.constant 0 : index
    %31 = vector.load %arg4[%c0_5, %c0_6] : memref<128x128xbf16, #tpu.memory_space<vmem>>, vector<128x128xbf16>
    %cst_7 = arith.constant dense<0.000000e+00> : vector<256x128xf32>
    %32 = tpu.matmul %30, %31, %cst_7 {dimension_numbers = #tpu.dot_dimension_numbers<[1], [0], [0], [1], [0, 0, 1, 1], [], []>} : vector<256x128xbf16>, vector<128x128xbf16>, vector<256x128xf32> -> vector<256x128xf32>
    %c0_8 = arith.constant 0 : index
    %c0_9 = arith.constant 0 : index
    %33 = vector.load %arg5[%c0_8, %c0_9] : memref<1x128xf32, #tpu.memory_space<vmem>>, vector<1x128xf32>
    %34 = vector.broadcast %33 : vector<1x128xf32> to vector<256x128xf32>
    %35 = arith.addf %32, %34 : vector<256x128xf32>
    %cst_10 = arith.constant 0.000000e+00 : f32
    %36 = vector.broadcast %cst_10 : f32 to vector<256x128xf32>
    %37 = arith.maximumf %35, %36 : vector<256x128xf32>
    %38 = arith.truncf %37 : vector<256x128xf32> to vector<256x128xbf16>
    %c0_11 = arith.constant 0 : index
    %c0_12 = arith.constant 0 : index
    %39 = vector.load %arg6[%c0_11, %c0_12] : memref<128x128xbf16, #tpu.memory_space<vmem>>, vector<128x128xbf16>
    %cst_13 = arith.constant dense<0.000000e+00> : vector<256x128xf32>
    %40 = tpu.matmul %38, %39, %cst_13 {dimension_numbers = #tpu.dot_dimension_numbers<[1], [0], [0], [1], [0, 0, 1, 1], [], []>} : vector<256x128xbf16>, vector<128x128xbf16>, vector<256x128xf32> -> vector<256x128xf32>
    %c0_14 = arith.constant 0 : index
    %c0_15 = arith.constant 0 : index
    %41 = vector.load %arg7[%c0_14, %c0_15] : memref<1x128xf32, #tpu.memory_space<vmem>>, vector<1x128xf32>
    %42 = vector.broadcast %41 : vector<1x128xf32> to vector<256x128xf32>
    %43 = arith.addf %40, %42 : vector<256x128xf32>
    %44 = arith.truncf %43 : vector<256x128xf32> to vector<256x128xbf16>
    %c0_16 = arith.constant 0 : index
    %c0_17 = arith.constant 0 : index
    %45 = vector.load %arg8[%c0_16, %c0_17] : memref<256x128xbf16, #tpu.memory_space<vmem>>, vector<256x128xbf16>
    tpu.vector_store %arg8[%c0_16, %c0_17], %44 {strides = array<i32>} : memref<256x128xbf16, #tpu.memory_space<vmem>>, vector<256x128xbf16>,
    return
  }
  func.func @transform_0(%arg0: i32) -> (i32, i32) {
    %c0_i32 = arith.constant 0 : i32
    %c0_i32_0 = arith.constant 0 : i32
    return %arg0, %c0_i32 : i32, i32
  }
  func.func @transform_1(%arg0: i32) -> (i32, i32) {
    %c0_i32 = arith.constant 0 : i32
    %c0_i32_0 = arith.constant 0 : i32
    %c0_i32_1 = arith.constant 0 : i32
    return %c0_i32, %c0_i32_0 : i32, i32
  }
  func.func @transform_2(%arg0: i32) -> (i32, i32) {
    %c0_i32 = arith.constant 0 : i32
    %c0_i32_0 = arith.constant 0 : i32
    %c0_i32_1 = arith.constant 0 : i32
    return %c0_i32, %c0_i32_0 : i32, i32
  }
  func.func @transform_3(%arg0: i32) -> (i32, i32) {
    %c0_i32 = arith.constant 0 : i32
    %c0_i32_0 = arith.constant 0 : i32
    %c0_i32_1 = arith.constant 0 : i32
    return %c0_i32, %c0_i32_0 : i32, i32
  }
  func.func @transform_4(%arg0: i32) -> (i32, i32) {
    %c0_i32 = arith.constant 0 : i32
    %c0_i32_0 = arith.constant 0 : i32
    %c0_i32_1 = arith.constant 0 : i32
    return %c0_i32, %c0_i32_0 : i32, i32
  }
  func.func @transform_5(%arg0: i32) -> (i32, i32) {
    %c0_i32 = arith.constant 0 : i32
    %c0_i32_0 = arith.constant 0 : i32
    %c0_i32_1 = arith.constant 0 : i32
    return %c0_i32, %c0_i32_0 : i32, i32
  }
  func.func @transform_6(%arg0: i32) -> (i32, i32) {
    %c0_i32 = arith.constant 0 : i32
    %c0_i32_0 = arith.constant 0 : i32
    %c0_i32_1 = arith.constant 0 : i32
    return %c0_i32, %c0_i32_0 : i32, i32
  }
  func.func @transform_7(%arg0: i32) -> (i32, i32) {
    %c0_i32 = arith.constant 0 : i32
    %c0_i32_0 = arith.constant 0 : i32
    return %arg0, %c0_i32 : i32, i32
  }
}

</mosaic_0001>

<llo_original>
// kernel: tpu_custom_call.1
$region0: #{tpu_custom_call.1}
  #allocation0 [shape = 'u32[]', space=smem, size = 0x4, offset = 0x4, fixed_abs, tag = 'smem constant byte address 0x4 - core index']
  #allocation1 [shape = 'u32[144,128]{1,0:T(1,128)}', space=vmem, size = 0x12000, scoped, tag = 'internal scratch']
  %s0 = inlined_call_operand.vmem [shape: f32[256,4], index: 0, kind: input, shape index: {}]
  %s1 = inlined_call_operand.vmem [shape: f32[4,128], index: 1, kind: input, shape index: {}]
  %s2 = inlined_call_operand.vmem [shape: f32[1,128], index: 2, kind: input, shape index: {}]
  %s3 = inlined_call_operand.vmem [shape: bf16[128,128], index: 3, kind: input, shape index: {}]
  %s4 = inlined_call_operand.vmem [shape: f32[1,128], index: 4, kind: input, shape index: {}]
  %s5 = inlined_call_operand.vmem [shape: bf16[128,128], index: 5, kind: input, shape index: {}]
  %s6 = inlined_call_operand.vmem [shape: f32[1,128], index: 6, kind: input, shape index: {}]
  %s7 = inlined_call_operand.hbm [shape: bf16[256,128], index: 7, kind: output, shape index: {}]
  %s8 = sld [smem:[#allocation0]]
  $region38: #{tpu_custom_call.1} parent=0
    _
  %s10 = ssub.s32 1, %s8
  %s11 = scalar_select 0, %s10, %s8
  $region1: #{tpu_custom_call.1} parent=0
    #allocation2 [shape = 'u8[65536]{0}', space=vmem, size = 0x10000, scoped, tag = 'output window, operand 0, single buffered']
    #allocation3 [shape = 's32[1]{0}', space=sflag, size = 0x4, scoped, tag = 'scoped memory for tpu_custom_call.1']
    %12 = vsyncpa [#allocation3], 0
    // Predicated region
    $region2: #{tpu_custom_call.1} parent=1 // pred_check
      _
    $region3: #{tpu_custom_call.1} parent=1 // pred_check_branch
      %14 = sbr.rel (0) target = $region5
    $region4: #{tpu_custom_call.1} parent=1 // pred_region
      _
    $region5: #{tpu_custom_call.1} parent=1 // pred_fallthru
      _
    // Predicated region
    $region6: #{tpu_custom_call.1} parent=1 // pred_check
      _
    $region7: #{tpu_custom_call.1} parent=1 // pred_check_branch
      %16 = sbr.rel (0) target = $region9
    $region8: #{tpu_custom_call.1} parent=1 // pred_region
      _
    $region9: #{tpu_custom_call.1} parent=1 // pred_fallthru
      _
    // Predicated region
    $region10: #{tpu_custom_call.1} parent=1 // pred_check
      _
    $region11: #{tpu_custom_call.1} parent=1 // pred_check_branch
      %18 = sbr.rel (0) target = $region13
    $region12: #{tpu_custom_call.1} parent=1 // pred_region
      _
    $region13: #{tpu_custom_call.1} parent=1 // pred_fallthru
      _
    // Predicated region
    $region14: #{tpu_custom_call.1} parent=1 // pred_check
      _
    $region15: #{tpu_custom_call.1} parent=1 // pred_check_branch
      %20 = sbr.rel (0) target = $region17
    $region16: #{tpu_custom_call.1} parent=1 // pred_region
      _
    $region17: #{tpu_custom_call.1} parent=1 // pred_fallthru
      _
    // Predicated region
    $region18: #{tpu_custom_call.1} parent=1 // pred_check
      _
    $region19: #{tpu_custom_call.1} parent=1 // pred_check_branch
      %22 = sbr.rel (0) target = $region21
    $region20: #{tpu_custom_call.1} parent=1 // pred_region
      _
    $region21: #{tpu_custom_call.1} parent=1 // pred_fallthru
      _
    // Predicated region
    $region22: #{tpu_custom_call.1} parent=1 // pred_check
      _
    $region23: #{tpu_custom_call.1} parent=1 // pred_check_branch
      %24 = sbr.rel (0) target = $region25
    $region24: #{tpu_custom_call.1} parent=1 // pred_region
      _
    $region25: #{tpu_custom_call.1} parent=1 // pred_fallthru
      _
    // Predicated region
    $region26: #{tpu_custom_call.1} parent=1 // pred_check
      _
    $region27: #{tpu_custom_call.1} parent=1 // pred_check_branch
      %26 = sbr.rel (0) target = $region29
    $region28: #{tpu_custom_call.1} parent=1 // pred_region
      _
    $region29: #{tpu_custom_call.1} parent=1 // pred_fallthru
      _
    %v28 = vld [vmem:[%s0] sm:$0xff]
    %v29 = vld [vmem:[%s0 + $0x8] sm:$0xff]
    %v30 = vld [vmem:[%s0 + $0x10] sm:$0xff]
    %v31 = vld [vmem:[%s0 + $0x18] sm:$0xff]
    %v32 = vld [vmem:[%s0 + $0x20] sm:$0xff]
    %v33 = vld [vmem:[%s0 + $0x28] sm:$0xff]
    %v34 = vld [vmem:[%s0 + $0x30] sm:$0xff]
    %v35 = vld [vmem:[%s0 + $0x38] sm:$0xff]
    %v36 = vld [vmem:[%s0 + $0x40] sm:$0xff]
    %v37 = vld [vmem:[%s0 + $0x48] sm:$0xff]
    %v38 = vld [vmem:[%s0 + $0x50] sm:$0xff]
    %v39 = vld [vmem:[%s0 + $0x58] sm:$0xff]
    %v40 = vld [vmem:[%s0 + $0x60] sm:$0xff]
    %v41 = vld [vmem:[%s0 + $0x68] sm:$0xff]
    %v42 = vld [vmem:[%s0 + $0x70] sm:$0xff]
    %v43 = vld [vmem:[%s0 + $0x78] sm:$0xff]
    %v44 = vld [vmem:[%s0 + $0x80] sm:$0xff]
    %v45 = vld [vmem:[%s0 + $0x88] sm:$0xff]
    %v46 = vld [vmem:[%s0 + $0x90] sm:$0xff]
    %v47 = vld [vmem:[%s0 + $0x98] sm:$0xff]
    %v48 = vld [vmem:[%s0 + $0xa0] sm:$0xff]
    %v49 = vld [vmem:[%s0 + $0xa8] sm:$0xff]
    %v50 = vld [vmem:[%s0 + $0xb0] sm:$0xff]
    %v51 = vld [vmem:[%s0 + $0xb8] sm:$0xff]
    %v52 = vld [vmem:[%s0 + $0xc0] sm:$0xff]
    %v53 = vld [vmem:[%s0 + $0xc8] sm:$0xff]
    %v54 = vld [vmem:[%s0 + $0xd0] sm:$0xff]
    %v55 = vld [vmem:[%s0 + $0xd8] sm:$0xff]
    %v56 = vld [vmem:[%s0 + $0xe0] sm:$0xff]
    %v57 = vld [vmem:[%s0 + $0xe8] sm:$0xff]
    %v58 = vld [vmem:[%s0 + $0xf0] sm:$0xff]
    %v59 = vld [vmem:[%s0 + $0xf8] sm:$0xff]
    %v60 = vld [vmem:[%s1] sm:$0xf]
    %v61 = vld [vmem:[%s2] sm:$0x1]
    %63 = vset.pattern.permute.xlu0 0
    %64 = vperm.xlu0 %63, %v28
    %v65 = vpop.permute.xlu0 %64
    %68 = vset.pattern.permute.xlu0 0
    %69 = vperm.xlu0 %68, %v29
    %v70 = vpop.permute.xlu0 %69
    %73 = vset.pattern.permute.xlu0 0
    %74 = vperm.xlu0 %73, %v30
    %v75 = vpop.permute.xlu0 %74
    %78 = vset.pattern.permute.xlu0 0
    %79 = vperm.xlu0 %78, %v31
    %v80 = vpop.permute.xlu0 %79
    %83 = vset.pattern.permute.xlu0 0
    %84 = vperm.xlu0 %83, %v32
    %v85 = vpop.permute.xlu0 %84
    %88 = vset.pattern.permute.xlu0 0
    %89 = vperm.xlu0 %88, %v33
    %v90 = vpop.permute.xlu0 %89
    %93 = vset.pattern.permute.xlu0 0
    %94 = vperm.xlu0 %93, %v34
    %v95 = vpop.permute.xlu0 %94
    %98 = vset.pattern.permute.xlu0 0
    %99 = vperm.xlu0 %98, %v35
    %v100 = vpop.permute.xlu0 %99
    %103 = vset.pattern.permute.xlu0 0
    %104 = vperm.xlu0 %103, %v36
    %v105 = vpop.permute.xlu0 %104
    %108 = vset.pattern.permute.xlu0 0
    %109 = vperm.xlu0 %108, %v37
    %v110 = vpop.permute.xlu0 %109
    %113 = vset.pattern.permute.xlu0 0
    %114 = vperm.xlu0 %113, %v38
    %v115 = vpop.permute.xlu0 %114
    %118 = vset.pattern.permute.xlu0 0
    %119 = vperm.xlu0 %118, %v39
    %v120 = vpop.permute.xlu0 %119
    %123 = vset.pattern.permute.xlu0 0
    %124 = vperm.xlu0 %123, %v40
    %v125 = vpop.permute.xlu0 %124
    %128 = vset.pattern.permute.xlu0 0
    %129 = vperm.xlu0 %128, %v41
    %v130 = vpop.permute.xlu0 %129
    %133 = vset.pattern.permute.xlu0 0
    %134 = vperm.xlu0 %133, %v42
    %v135 = vpop.permute.xlu0 %134
    %138 = vset.pattern.permute.xlu0 0
    %139 = vperm.xlu0 %138, %v43
    %v140 = vpop.permute.xlu0 %139
    %143 = vset.pattern.permute.xlu0 0
    %144 = vperm.xlu0 %143, %v44
    %v145 = vpop.permute.xlu0 %144
    %148 = vset.pattern.permute.xlu0 0
    %149 = vperm.xlu0 %148, %v45
    %v150 = vpop.permute.xlu0 %149
    %153 = vset.pattern.permute.xlu0 0
    %154 = vperm.xlu0 %153, %v46
    %v155 = vpop.permute.xlu0 %154
    %158 = vset.pattern.permute.xlu0 0
    %159 = vperm.xlu0 %158, %v47
    %v160 = vpop.permute.xlu0 %159
    %163 = vset.pattern.permute.xlu0 0
    %164 = vperm.xlu0 %163, %v48
    %v165 = vpop.permute.xlu0 %164
    %168 = vset.pattern.permute.xlu0 0
    %169 = vperm.xlu0 %168, %v49
    %v170 = vpop.permute.xlu0 %169
    %173 = vset.pattern.permute.xlu0 0
    %174 = vperm.xlu0 %173, %v50
    %v175 = vpop.permute.xlu0 %174
    %178 = vset.pattern.permute.xlu0 0
    %179 = vperm.xlu0 %178, %v51
    %v180 = vpop.permute.xlu0 %179
    %183 = vset.pattern.permute.xlu0 0
    %184 = vperm.xlu0 %183, %v52
    %v185 = vpop.permute.xlu0 %184
    %188 = vset.pattern.permute.xlu0 0
    %189 = vperm.xlu0 %188, %v53
    %v190 = vpop.permute.xlu0 %189
    %193 = vset.pattern.permute.xlu0 0
    %194 = vperm.xlu0 %193, %v54
    %v195 = vpop.permute.xlu0 %194
    %198 = vset.pattern.permute.xlu0 0
    %199 = vperm.xlu0 %198, %v55
    %v200 = vpop.permute.xlu0 %199
    %203 = vset.pattern.permute.xlu0 0
    %204 = vperm.xlu0 %203, %v56
    %v205 = vpop.permute.xlu0 %204
    %208 = vset.pattern.permute.xlu0 0
    %209 = vperm.xlu0 %208, %v57
    %v210 = vpop.permute.xlu0 %209
    %213 = vset.pattern.permute.xlu0 0
    %214 = vperm.xlu0 %213, %v58
    %v215 = vpop.permute.xlu0 %214
    %218 = vset.pattern.permute.xlu0 0
    %219 = vperm.xlu0 %218, %v59
    %v220 = vpop.permute.xlu0 %219
    %v222 = vlaneseq
    %v223 = vshrl.u32 %v222, 7
    %v224 = vsub.s32 0, %v223
    %v225 = vrot.slane %v60, %v224
    %v226 = vmul.f32 %v65, %v225
    %v227 = vmul.f32 %v70, %v225
    %v228 = vmul.f32 %v75, %v225
    %v229 = vmul.f32 %v80, %v225
    %v230 = vmul.f32 %v85, %v225
    %v231 = vmul.f32 %v90, %v225
    %v232 = vmul.f32 %v95, %v225
    %v233 = vmul.f32 %v100, %v225
    %v234 = vmul.f32 %v105, %v225
    %v235 = vmul.f32 %v110, %v225
    %v236 = vmul.f32 %v115, %v225
    %v237 = vmul.f32 %v120, %v225
    %v238 = vmul.f32 %v125, %v225
    %v239 = vmul.f32 %v130, %v225
    %v240 = vmul.f32 %v135, %v225
    %v241 = vmul.f32 %v140, %v225
    %v242 = vmul.f32 %v145, %v225
    %v243 = vmul.f32 %v150, %v225
    %v244 = vmul.f32 %v155, %v225
    %v245 = vmul.f32 %v160, %v225
    %v246 = vmul.f32 %v165, %v225
    %v247 = vmul.f32 %v170, %v225
    %v248 = vmul.f32 %v175, %v225
    %v249 = vmul.f32 %v180, %v225
    %v250 = vmul.f32 %v185, %v225
    %v251 = vmul.f32 %v190, %v225
    %v252 = vmul.f32 %v195, %v225
    %v253 = vmul.f32 %v200, %v225
    %v254 = vmul.f32 %v205, %v225
    %v255 = vmul.f32 %v210, %v225
    %v256 = vmul.f32 %v215, %v225
    %v257 = vmul.f32 %v220, %v225
    %v259 = vlaneseq
    %v260 = vshrl.u32 %v259, 7
    %v261 = vsub.s32 0, %v260
    %v262 = vrot.slane %v61, %v261
    %v264 = vadd.f32 %v262, %v226
    %v265 = vadd.f32 %v262, %v227
    %v266 = vadd.f32 %v262, %v228
    %v267 = vadd.f32 %v262, %v229
    %v268 = vadd.f32 %v262, %v230
    %v269 = vadd.f32 %v262, %v231
    %v270 = vadd.f32 %v262, %v232
    %v271 = vadd.f32 %v262, %v233
    %v272 = vadd.f32 %v262, %v234
    %v273 = vadd.f32 %v262, %v235
    %v274 = vadd.f32 %v262, %v236
    %v275 = vadd.f32 %v262, %v237
    %v276 = vadd.f32 %v262, %v238
    %v277 = vadd.f32 %v262, %v239
    %v278 = vadd.f32 %v262, %v240
    %v279 = vadd.f32 %v262, %v241
    %v280 = vadd.f32 %v262, %v242
    %v281 = vadd.f32 %v262, %v243
    %v282 = vadd.f32 %v262, %v244
    %v283 = vadd.f32 %v262, %v245
    %v284 = vadd.f32 %v262, %v246
    %v285 = vadd.f32 %v262, %v247
    %v286 = vadd.f32 %v262, %v248
    %v287 = vadd.f32 %v262, %v249
    %v288 = vadd.f32 %v262, %v250
    %v289 = vadd.f32 %v262, %v251
    %v290 = vadd.f32 %v262, %v252
    %v291 = vadd.f32 %v262, %v253
    %v292 = vadd.f32 %v262, %v254
    %v293 = vadd.f32 %v262, %v255
    %v294 = vadd.f32 %v262, %v256
    %v295 = vadd.f32 %v262, %v257
    %296 = vset.pattern.permute.xlu0 1
    %297 = vperm.xlu0 %296, %v28
    %v298 = vpop.permute.xlu0 %297
    %300 = vset.pattern.permute.xlu0 1
    %301 = vperm.xlu0 %300, %v29
    %v302 = vpop.permute.xlu0 %301
    %304 = vset.pattern.permute.xlu0 1
    %305 = vperm.xlu0 %304, %v30
    %v306 = vpop.permute.xlu0 %305
    %308 = vset.pattern.permute.xlu0 1
    %309 = vperm.xlu0 %308, %v31
    %v310 = vpop.permute.xlu0 %309
    %312 = vset.pattern.permute.xlu0 1
    %313 = vperm.xlu0 %312, %v32
    %v314 = vpop.permute.xlu0 %313
    %316 = vset.pattern.permute.xlu0 1
    %317 = vperm.xlu0 %316, %v33
    %v318 = vpop.permute.xlu0 %317
    %320 = vset.pattern.permute.xlu0 1
    %321 = vperm.xlu0 %320, %v34
    %v322 = vpop.permute.xlu0 %321
    %324 = vset.pattern.permute.xlu0 1
    %325 = vperm.xlu0 %324, %v35
    %v326 = vpop.permute.xlu0 %325
    %328 = vset.pattern.permute.xlu0 1
    %329 = vperm.xlu0 %328, %v36
    %v330 = vpop.permute.xlu0 %329
    %332 = vset.pattern.permute.xlu0 1
    %333 = vperm.xlu0 %332, %v37
    %v334 = vpop.permute.xlu0 %333
    %336 = vset.pattern.permute.xlu0 1
    %337 = vperm.xlu0 %336, %v38
    %v338 = vpop.permute.xlu0 %337
    %340 = vset.pattern.permute.xlu0 1
    %341 = vperm.xlu0 %340, %v39
    %v342 = vpop.permute.xlu0 %341
    %344 = vset.pattern.permute.xlu0 1
    %345 = vperm.xlu0 %344, %v40
    %v346 = vpop.permute.xlu0 %345
    %348 = vset.pattern.permute.xlu0 1
    %349 = vperm.xlu0 %348, %v41
    %v350 = vpop.permute.xlu0 %349
    %352 = vset.pattern.permute.xlu0 1
    %353 = vperm.xlu0 %352, %v42
    %v354 = vpop.permute.xlu0 %353
    %356 = vset.pattern.permute.xlu0 1
    %357 = vperm.xlu0 %356, %v43
    %v358 = vpop.permute.xlu0 %357
    %360 = vset.pattern.permute.xlu0 1
    %361 = vperm.xlu0 %360, %v44
    %v362 = vpop.permute.xlu0 %361
    %364 = vset.pattern.permute.xlu0 1
    %365 = vperm.xlu0 %364, %v45
    %v366 = vpop.permute.xlu0 %365
    %368 = vset.pattern.permute.xlu0 1
    %369 = vperm.xlu0 %368, %v46
    %v370 = vpop.permute.xlu0 %369
    %372 = vset.pattern.permute.xlu0 1
    %373 = vperm.xlu0 %372, %v47
    %v374 = vpop.permute.xlu0 %373
    %376 = vset.pattern.permute.xlu0 1
    %377 = vperm.xlu0 %376, %v48
    %v378 = vpop.permute.xlu0 %377
    %380 = vset.pattern.permute.xlu0 1
    %381 = vperm.xlu0 %380, %v49
    %v382 = vpop.permute.xlu0 %381
    %384 = vset.pattern.permute.xlu0 1
    %385 = vperm.xlu0 %384, %v50
    %v386 = vpop.permute.xlu0 %385
    %388 = vset.pattern.permute.xlu0 1
    %389 = vperm.xlu0 %388, %v51
    %v390 = vpop.permute.xlu0 %389
    %392 = vset.pattern.permute.xlu0 1
    %393 = vperm.xlu0 %392, %v52
    %v394 = vpop.permute.xlu0 %393
    %396 = vset.pattern.permute.xlu0 1
    %397 = vperm.xlu0 %396, %v53
    %v398 = vpop.permute.xlu0 %397
    %400 = vset.pattern.permute.xlu0 1
    %401 = vperm.xlu0 %400, %v54
    %v402 = vpop.permute.xlu0 %401
    %404 = vset.pattern.permute.xlu0 1
    %405 = vperm.xlu0 %404, %v55
    %v406 = vpop.permute.xlu0 %405
    %408 = vset.pattern.permute.xlu0 1
    %409 = vperm.xlu0 %408, %v56
    %v410 = vpop.permute.xlu0 %409
    %412 = vset.pattern.permute.xlu0 1
    %413 = vperm.xlu0 %412, %v57
    %v414 = vpop.permute.xlu0 %413
    %416 = vset.pattern.permute.xlu0 1
    %417 = vperm.xlu0 %416, %v58
    %v418 = vpop.permute.xlu0 %417
    %420 = vset.pattern.permute.xlu0 1
    %421 = vperm.xlu0 %420, %v59
    %v422 = vpop.permute.xlu0 %421
    %v424 = vlaneseq
    %v425 = vshrl.u32 %v424, 7
    %v426 = vsub.s32 1, %v425
    %v427 = vrot.slane %v60, %v426
    %v428 = vmul.f32 %v298, %v427
    %v429 = vmul.f32 %v302, %v427
    %v430 = vmul.f32 %v306, %v427
    %v431 = vmul.f32 %v310, %v427
    %v432 = vmul.f32 %v314, %v427
    %v433 = vmul.f32 %v318, %v427
    %v434 = vmul.f32 %v322, %v427
    %v435 = vmul.f32 %v326, %v427
    %v436 = vmul.f32 %v330, %v427
    %v437 = vmul.f32 %v334, %v427
    %v438 = vmul.f32 %v338, %v427
    %v439 = vmul.f32 %v342, %v427
    %v440 = vmul.f32 %v346, %v427
    %v441 = vmul.f32 %v350, %v427
    %v442 = vmul.f32 %v354, %v427
    %v443 = vmul.f32 %v358, %v427
    %v444 = vmul.f32 %v362, %v427
    %v445 = vmul.f32 %v366, %v427
    %v446 = vmul.f32 %v370, %v427
    %v447 = vmul.f32 %v374, %v427
    %v448 = vmul.f32 %v378, %v427
    %v449 = vmul.f32 %v382, %v427
    %v450 = vmul.f32 %v386, %v427
    %v451 = vmul.f32 %v390, %v427
    %v452 = vmul.f32 %v394, %v427
    %v453 = vmul.f32 %v398, %v427
    %v454 = vmul.f32 %v402, %v427
    %v455 = vmul.f32 %v406, %v427
    %v456 = vmul.f32 %v410, %v427
    %v457 = vmul.f32 %v414, %v427
    %v458 = vmul.f32 %v418, %v427
    %v459 = vmul.f32 %v422, %v427
    %v460 = vadd.f32 %v264, %v428
    %v461 = vadd.f32 %v265, %v429
    %v462 = vadd.f32 %v266, %v430
    %v463 = vadd.f32 %v267, %v431
    %v464 = vadd.f32 %v268, %v432
    %v465 = vadd.f32 %v269, %v433
    %v466 = vadd.f32 %v270, %v434
    %v467 = vadd.f32 %v271, %v435
    %v468 = vadd.f32 %v272, %v436
    %v469 = vadd.f32 %v273, %v437
    %v470 = vadd.f32 %v274, %v438
    %v471 = vadd.f32 %v275, %v439
    %v472 = vadd.f32 %v276, %v440
    %v473 = vadd.f32 %v277, %v441
    %v474 = vadd.f32 %v278, %v442
    %v475 = vadd.f32 %v279, %v443
    %v476 = vadd.f32 %v280, %v444
    %v477 = vadd.f32 %v281, %v445
    %v478 = vadd.f32 %v282, %v446
    %v479 = vadd.f32 %v283, %v447
    %v480 = vadd.f32 %v284, %v448
    %v481 = vadd.f32 %v285, %v449
    %v482 = vadd.f32 %v286, %v450
    %v483 = vadd.f32 %v287, %v451
    %v484 = vadd.f32 %v288, %v452
    %v485 = vadd.f32 %v289, %v453
    %v486 = vadd.f32 %v290, %v454
    %v487 = vadd.f32 %v291, %v455
    %v488 = vadd.f32 %v292, %v456
    %v489 = vadd.f32 %v293, %v457
    %v490 = vadd.f32 %v294, %v458
    %v491 = vadd.f32 %v295, %v459
    %492 = vset.pattern.permute.xlu0 2
    %493 = vperm.xlu0 %492, %v28
    %v494 = vpop.permute.xlu0 %493
    %496 = vset.pattern.permute.xlu0 2
    %497 = vperm.xlu0 %496, %v29
    %v498 = vpop.permute.xlu0 %497
    %500 = vset.pattern.permute.xlu0 2
    %501 = vperm.xlu0 %500, %v30
    %v502 = vpop.permute.xlu0 %501
    %504 = vset.pattern.permute.xlu0 2
    %505 = vperm.xlu0 %504, %v31
    %v506 = vpop.permute.xlu0 %505
    %508 = vset.pattern.permute.xlu0 2
    %509 = vperm.xlu0 %508, %v32
    %v510 = vpop.permute.xlu0 %509
    %512 = vset.pattern.permute.xlu0 2
    %513 = vperm.xlu0 %512, %v33
    %v514 = vpop.permute.xlu0 %513
    %516 = vset.pattern.permute.xlu0 2
    %517 = vperm.xlu0 %516, %v34
    %v518 = vpop.permute.xlu0 %517
    %520 = vset.pattern.permute.xlu0 2
    %521 = vperm.xlu0 %520, %v35
    %v522 = vpop.permute.xlu0 %521
    %524 = vset.pattern.permute.xlu0 2
    %525 = vperm.xlu0 %524, %v36
    %v526 = vpop.permute.xlu0 %525
    %528 = vset.pattern.permute.xlu0 2
    %529 = vperm.xlu0 %528, %v37
    %v530 = vpop.permute.xlu0 %529
    %532 = vset.pattern.permute.xlu0 2
    %533 = vperm.xlu0 %532, %v38
    %v534 = vpop.permute.xlu0 %533
    %536 = vset.pattern.permute.xlu0 2
    %537 = vperm.xlu0 %536, %v39
    %v538 = vpop.permute.xlu0 %537
    %540 = vset.pattern.permute.xlu0 2
    %541 = vperm.xlu0 %540, %v40
    %v542 = vpop.permute.xlu0 %541
    %544 = vset.pattern.permute.xlu0 2
    %545 = vperm.xlu0 %544, %v41
    %v546 = vpop.permute.xlu0 %545
    %548 = vset.pattern.permute.xlu0 2
    %549 = vperm.xlu0 %548, %v42
    %v550 = vpop.permute.xlu0 %549
    %552 = vset.pattern.permute.xlu0 2
    %553 = vperm.xlu0 %552, %v43
    %v554 = vpop.permute.xlu0 %553
    %556 = vset.pattern.permute.xlu0 2
    %557 = vperm.xlu0 %556, %v44
    %v558 = vpop.permute.xlu0 %557
    %560 = vset.pattern.permute.xlu0 2
    %561 = vperm.xlu0 %560, %v45
    %v562 = vpop.permute.xlu0 %561
    %564 = vset.pattern.permute.xlu0 2
    %565 = vperm.xlu0 %564, %v46
    %v566 = vpop.permute.xlu0 %565
    %568 = vset.pattern.permute.xlu0 2
    %569 = vperm.xlu0 %568, %v47
    %v570 = vpop.permute.xlu0 %569
    %572 = vset.pattern.permute.xlu0 2
    %573 = vperm.xlu0 %572, %v48
    %v574 = vpop.permute.xlu0 %573
    %576 = vset.pattern.permute.xlu0 2
    %577 = vperm.xlu0 %576, %v49
    %v578 = vpop.permute.xlu0 %577
    %580 = vset.pattern.permute.xlu0 2
    %581 = vperm.xlu0 %580, %v50
    %v582 = vpop.permute.xlu0 %581
    %584 = vset.pattern.permute.xlu0 2
    %585 = vperm.xlu0 %584, %v51
    %v586 = vpop.permute.xlu0 %585
    %588 = vset.pattern.permute.xlu0 2
    %589 = vperm.xlu0 %588, %v52
    %v590 = vpop.permute.xlu0 %589
    %592 = vset.pattern.permute.xlu0 2
    %593 = vperm.xlu0 %592, %v53
    %v594 = vpop.permute.xlu0 %593
    %596 = vset.pattern.permute.xlu0 2
    %597 = vperm.xlu0 %596, %v54
    %v598 = vpop.permute.xlu0 %597
    %600 = vset.pattern.permute.xlu0 2
    %601 = vperm.xlu0 %600, %v55
    %v602 = vpop.permute.xlu0 %601
    %604 = vset.pattern.permute.xlu0 2
    %605 = vperm.xlu0 %604, %v56
    %v606 = vpop.permute.xlu0 %605
    %608 = vset.pattern.permute.xlu0 2
    %609 = vperm.xlu0 %608, %v57
    %v610 = vpop.permute.xlu0 %609
    %612 = vset.pattern.permute.xlu0 2
    %613 = vperm.xlu0 %612, %v58
    %v614 = vpop.permute.xlu0 %613
    %616 = vset.pattern.permute.xlu0 2
    %617 = vperm.xlu0 %616, %v59
    %v618 = vpop.permute.xlu0 %617
    %v620 = vlaneseq
    %v621 = vshrl.u32 %v620, 7
    %v622 = vsub.s32 2, %v621
    %v623 = vrot.slane %v60, %v622
    %v624 = vmul.f32 %v494, %v623
    %v625 = vmul.f32 %v498, %v623
    %v626 = vmul.f32 %v502, %v623
    %v627 = vmul.f32 %v506, %v623
    %v628 = vmul.f32 %v510, %v623
    %v629 = vmul.f32 %v514, %v623
    %v630 = vmul.f32 %v518, %v623
    %v631 = vmul.f32 %v522, %v623
    %v632 = vmul.f32 %v526, %v623
    %v633 = vmul.f32 %v530, %v623
    %v634 = vmul.f32 %v534, %v623
    %v635 = vmul.f32 %v538, %v623
    %v636 = vmul.f32 %v542, %v623
    %v637 = vmul.f32 %v546, %v623
    %v638 = vmul.f32 %v550, %v623
    %v639 = vmul.f32 %v554, %v623
    %v640 = vmul.f32 %v558, %v623
    %v641 = vmul.f32 %v562, %v623
    %v642 = vmul.f32 %v566, %v623
    %v643 = vmul.f32 %v570, %v623
    %v644 = vmul.f32 %v574, %v623
    %v645 = vmul.f32 %v578, %v623
    %v646 = vmul.f32 %v582, %v623
    %v647 = vmul.f32 %v586, %v623
    %v648 = vmul.f32 %v590, %v623
    %v649 = vmul.f32 %v594, %v623
    %v650 = vmul.f32 %v598, %v623
    %v651 = vmul.f32 %v602, %v623
    %v652 = vmul.f32 %v606, %v623
    %v653 = vmul.f32 %v610, %v623
    %v654 = vmul.f32 %v614, %v623
    %v655 = vmul.f32 %v618, %v623
    %v656 = vadd.f32 %v460, %v624
    %v657 = vadd.f32 %v461, %v625
    %v658 = vadd.f32 %v462, %v626
    %v659 = vadd.f32 %v463, %v627
    %v660 = vadd.f32 %v464, %v628
    %v661 = vadd.f32 %v465, %v629
    %v662 = vadd.f32 %v466, %v630
    %v663 = vadd.f32 %v467, %v631
    %v664 = vadd.f32 %v468, %v632
    %v665 = vadd.f32 %v469, %v633
    %v666 = vadd.f32 %v470, %v634
    %v667 = vadd.f32 %v471, %v635
    %v668 = vadd.f32 %v472, %v636
    %v669 = vadd.f32 %v473, %v637
    %v670 = vadd.f32 %v474, %v638
    %v671 = vadd.f32 %v475, %v639
    %v672 = vadd.f32 %v476, %v640
    %v673 = vadd.f32 %v477, %v641
    %v674 = vadd.f32 %v478, %v642
    %v675 = vadd.f32 %v479, %v643
    %v676 = vadd.f32 %v480, %v644
    %v677 = vadd.f32 %v481, %v645
    %v678 = vadd.f32 %v482, %v646
    %v679 = vadd.f32 %v483, %v647
    %v680 = vadd.f32 %v484, %v648
    %v681 = vadd.f32 %v485, %v649
    %v682 = vadd.f32 %v486, %v650
    %v683 = vadd.f32 %v487, %v651
    %v684 = vadd.f32 %v488, %v652
    %v685 = vadd.f32 %v489, %v653
    %v686 = vadd.f32 %v490, %v654
    %v687 = vadd.f32 %v491, %v655
    %688 = vset.pattern.permute.xlu0 3
    %689 = vperm.xlu0 %688, %v28
    %v690 = vpop.permute.xlu0 %689
    %692 = vset.pattern.permute.xlu0 3
    %693 = vperm.xlu0 %692, %v29
    %v694 = vpop.permute.xlu0 %693
    %696 = vset.pattern.permute.xlu0 3
    %697 = vperm.xlu0 %696, %v30
    %v698 = vpop.permute.xlu0 %697
    %700 = vset.pattern.permute.xlu0 3
    %701 = vperm.xlu0 %700, %v31
    %v702 = vpop.permute.xlu0 %701
    %704 = vset.pattern.permute.xlu0 3
    %705 = vperm.xlu0 %704, %v32
    %v706 = vpop.permute.xlu0 %705
    %708 = vset.pattern.permute.xlu0 3
    %709 = vperm.xlu0 %708, %v33
    %v710 = vpop.permute.xlu0 %709
    %712 = vset.pattern.permute.xlu0 3
    %713 = vperm.xlu0 %712, %v34
    %v714 = vpop.permute.xlu0 %713
    %716 = vset.pattern.permute.xlu0 3
    %717 = vperm.xlu0 %716, %v35
    %v718 = vpop.permute.xlu0 %717
    %720 = vset.pattern.permute.xlu0 3
    %721 = vperm.xlu0 %720, %v36
    %v722 = vpop.permute.xlu0 %721
    %724 = vset.pattern.permute.xlu0 3
    %725 = vperm.xlu0 %724, %v37
    %v726 = vpop.permute.xlu0 %725
    %728 = vset.pattern.permute.xlu0 3
    %729 = vperm.xlu0 %728, %v38
    %v730 = vpop.permute.xlu0 %729
    %732 = vset.pattern.permute.xlu0 3
    %733 = vperm.xlu0 %732, %v39
    %v734 = vpop.permute.xlu0 %733
    %736 = vset.pattern.permute.xlu0 3
    %737 = vperm.xlu0 %736, %v40
    %v738 = vpop.permute.xlu0 %737
    %740 = vset.pattern.permute.xlu0 3
    %741 = vperm.xlu0 %740, %v41
    %v742 = vpop.permute.xlu0 %741
    %744 = vset.pattern.permute.xlu0 3
    %745 = vperm.xlu0 %744, %v42
    %v746 = vpop.permute.xlu0 %745
    %748 = vset.pattern.permute.xlu0 3
    %749 = vperm.xlu0 %748, %v43
    %v750 = vpop.permute.xlu0 %749
    %752 = vset.pattern.permute.xlu0 3
    %753 = vperm.xlu0 %752, %v44
    %v754 = vpop.permute.xlu0 %753
    %756 = vset.pattern.permute.xlu0 3
    %757 = vperm.xlu0 %756, %v45
    %v758 = vpop.permute.xlu0 %757
    %760 = vset.pattern.permute.xlu0 3
    %761 = vperm.xlu0 %760, %v46
    %v762 = vpop.permute.xlu0 %761
    %764 = vset.pattern.permute.xlu0 3
    %765 = vperm.xlu0 %764, %v47
    %v766 = vpop.permute.xlu0 %765
    %768 = vset.pattern.permute.xlu0 3
    %769 = vperm.xlu0 %768, %v48
    %v770 = vpop.permute.xlu0 %769
    %772 = vset.pattern.permute.xlu0 3
    %773 = vperm.xlu0 %772, %v49
    %v774 = vpop.permute.xlu0 %773
    %776 = vset.pattern.permute.xlu0 3
    %777 = vperm.xlu0 %776, %v50
    %v778 = vpop.permute.xlu0 %777
    %780 = vset.pattern.permute.xlu0 3
    %781 = vperm.xlu0 %780, %v51
    %v782 = vpop.permute.xlu0 %781
    %784 = vset.pattern.permute.xlu0 3
    %785 = vperm.xlu0 %784, %v52
    %v786 = vpop.permute.xlu0 %785
    %788 = vset.pattern.permute.xlu0 3
    %789 = vperm.xlu0 %788, %v53
    %v790 = vpop.permute.xlu0 %789
    %792 = vset.pattern.permute.xlu0 3
    %793 = vperm.xlu0 %792, %v54
    %v794 = vpop.permute.xlu0 %793
    %796 = vset.pattern.permute.xlu0 3
    %797 = vperm.xlu0 %796, %v55
    %v798 = vpop.permute.xlu0 %797
    %800 = vset.pattern.permute.xlu0 3
    %801 = vperm.xlu0 %800, %v56
    %v802 = vpop.permute.xlu0 %801
    %804 = vset.pattern.permute.xlu0 3
    %805 = vperm.xlu0 %804, %v57
    %v806 = vpop.permute.xlu0 %805
    %808 = vset.pattern.permute.xlu0 3
    %809 = vperm.xlu0 %808, %v58
    %v810 = vpop.permute.xlu0 %809
    %812 = vset.pattern.permute.xlu0 3
    %813 = vperm.xlu0 %812, %v59
    %v814 = vpop.permute.xlu0 %813
    %v816 = vlaneseq
    %v817 = vshrl.u32 %v816, 7
    %v818 = vsub.s32 3, %v817
    %v819 = vrot.slane %v60, %v818
    %v820 = vmul.f32 %v690, %v819
    %v821 = vmul.f32 %v694, %v819
    %v822 = vmul.f32 %v698, %v819
    %v823 = vmul.f32 %v702, %v819
    %v824 = vmul.f32 %v706, %v819
    %v825 = vmul.f32 %v710, %v819
    %v826 = vmul.f32 %v714, %v819
    %v827 = vmul.f32 %v718, %v819
    %v828 = vmul.f32 %v722, %v819
    %v829 = vmul.f32 %v726, %v819
    %v830 = vmul.f32 %v730, %v819
    %v831 = vmul.f32 %v734, %v819
    %v832 = vmul.f32 %v738, %v819
    %v833 = vmul.f32 %v742, %v819
    %v834 = vmul.f32 %v746, %v819
    %v835 = vmul.f32 %v750, %v819
    %v836 = vmul.f32 %v754, %v819
    %v837 = vmul.f32 %v758, %v819
    %v838 = vmul.f32 %v762, %v819
    %v839 = vmul.f32 %v766, %v819
    %v840 = vmul.f32 %v770, %v819
    %v841 = vmul.f32 %v774, %v819
    %v842 = vmul.f32 %v778, %v819
    %v843 = vmul.f32 %v782, %v819
    %v844 = vmul.f32 %v786, %v819
    %v845 = vmul.f32 %v790, %v819
    %v846 = vmul.f32 %v794, %v819
    %v847 = vmul.f32 %v798, %v819
    %v848 = vmul.f32 %v802, %v819
    %v849 = vmul.f32 %v806, %v819
    %v850 = vmul.f32 %v810, %v819
    %v851 = vmul.f32 %v814, %v819
    %v852 = vadd.f32 %v656, %v820
    %v853 = vadd.f32 %v657, %v821
    %v854 = vadd.f32 %v658, %v822
    %v855 = vadd.f32 %v659, %v823
    %v856 = vadd.f32 %v660, %v824
    %v857 = vadd.f32 %v661, %v825
    %v858 = vadd.f32 %v662, %v826
    %v859 = vadd.f32 %v663, %v827
    %v860 = vadd.f32 %v664, %v828
    %v861 = vadd.f32 %v665, %v829
    %v862 = vadd.f32 %v666, %v830
    %v863 = vadd.f32 %v667, %v831
    %v864 = vadd.f32 %v668, %v832
    %v865 = vadd.f32 %v669, %v833
    %v866 = vadd.f32 %v670, %v834
    %v867 = vadd.f32 %v671, %v835
    %v868 = vadd.f32 %v672, %v836
    %v869 = vadd.f32 %v673, %v837
    %v870 = vadd.f32 %v674, %v838
    %v871 = vadd.f32 %v675, %v839
    %v872 = vadd.f32 %v676, %v840
    %v873 = vadd.f32 %v677, %v841
    %v874 = vadd.f32 %v678, %v842
    %v875 = vadd.f32 %v679, %v843
    %v876 = vadd.f32 %v680, %v844
    %v877 = vadd.f32 %v681, %v845
    %v878 = vadd.f32 %v682, %v846
    %v879 = vadd.f32 %v683, %v847
    %v880 = vadd.f32 %v684, %v848
    %v881 = vadd.f32 %v685, %v849
    %v882 = vadd.f32 %v686, %v850
    %v883 = vadd.f32 %v687, %v851
    %v884 = vmax.f32 %v852, 0.0
    %v885 = vmax.f32 %v853, 0.0
    %v886 = vmax.f32 %v854, 0.0
    %v887 = vmax.f32 %v855, 0.0
    %v888 = vmax.f32 %v856, 0.0
    %v889 = vmax.f32 %v857, 0.0
    %v890 = vmax.f32 %v858, 0.0
    %v891 = vmax.f32 %v859, 0.0
    %v892 = vmax.f32 %v860, 0.0
    %v893 = vmax.f32 %v861, 0.0
    %v894 = vmax.f32 %v862, 0.0
    %v895 = vmax.f32 %v863, 0.0
    %v896 = vmax.f32 %v864, 0.0
    %v897 = vmax.f32 %v865, 0.0
    %v898 = vmax.f32 %v866, 0.0
    %v899 = vmax.f32 %v867, 0.0
    %v900 = vmax.f32 %v868, 0.0
    %v901 = vmax.f32 %v869, 0.0
    %v902 = vmax.f32 %v870, 0.0
    %v903 = vmax.f32 %v871, 0.0
    %v904 = vmax.f32 %v872, 0.0
    %v905 = vmax.f32 %v873, 0.0
    %v906 = vmax.f32 %v874, 0.0
    %v907 = vmax.f32 %v875, 0.0
    %v908 = vmax.f32 %v876, 0.0
    %v909 = vmax.f32 %v877, 0.0
    %v910 = vmax.f32 %v878, 0.0
    %v911 = vmax.f32 %v879, 0.0
    %v912 = vmax.f32 %v880, 0.0
    %v913 = vmax.f32 %v881, 0.0
    %v914 = vmax.f32 %v882, 0.0
    %v915 = vmax.f32 %v883, 0.0
    %v916 = vpack.c.bf16 %v885, %v884
    %v917 = vpack.c.bf16 %v887, %v886
    %v918 = vpack.c.bf16 %v889, %v888
    %v919 = vpack.c.bf16 %v891, %v890
    %v920 = vpack.c.bf16 %v893, %v892
    %v921 = vpack.c.bf16 %v895, %v894
    %v922 = vpack.c.bf16 %v897, %v896
    %v923 = vpack.c.bf16 %v899, %v898
    %v924 = vpack.c.bf16 %v901, %v900
    %v925 = vpack.c.bf16 %v903, %v902
    %v926 = vpack.c.bf16 %v905, %v904
    %v927 = vpack.c.bf16 %v907, %v906
    %v928 = vpack.c.bf16 %v909, %v908
    %v929 = vpack.c.bf16 %v911, %v910
    %v930 = vpack.c.bf16 %v913, %v912
    %v931 = vpack.c.bf16 %v915, %v914
    %v932 = vld [vmem:[%s3] sm:$0xf]
    %v933 = vld [vmem:[%s3 + $0x4] sm:$0xf]
    %v934 = vld [vmem:[%s3 + $0x8] sm:$0xf]
    %v935 = vld [vmem:[%s3 + $0xc] sm:$0xf]
    %v936 = vld [vmem:[%s3 + $0x10] sm:$0xf]
    %v937 = vld [vmem:[%s3 + $0x14] sm:$0xf]
    %v938 = vld [vmem:[%s3 + $0x18] sm:$0xf]
    %v939 = vld [vmem:[%s3 + $0x1c] sm:$0xf]
    %v940 = vld [vmem:[%s3 + $0x20] sm:$0xf]
    %v941 = vld [vmem:[%s3 + $0x24] sm:$0xf]
    %v942 = vld [vmem:[%s3 + $0x28] sm:$0xf]
    %v943 = vld [vmem:[%s3 + $0x2c] sm:$0xf]
    %v944 = vld [vmem:[%s3 + $0x30] sm:$0xf]
    %v945 = vld [vmem:[%s3 + $0x34] sm:$0xf]
    %v946 = vld [vmem:[%s3 + $0x38] sm:$0xf]
    %v947 = vld [vmem:[%s3 + $0x3c] sm:$0xf]
    %v948 = vld [vmem:[%s4] sm:$0x1]
    %v950 = vlaneseq
    %v951 = vshrl.u32 %v950, 7
    %v952 = vsub.s32 0, %v951
    %v953 = vrot.slane %v948, %v952
    %v971 = vunpack.c.l.b16 %v932
    %v972 = vunpack.c.l.b16 %v933
    %v973 = vunpack.c.l.b16 %v934
    %v974 = vunpack.c.l.b16 %v935
    %v975 = vunpack.c.l.b16 %v936
    %v976 = vunpack.c.l.b16 %v937
    %v977 = vunpack.c.l.b16 %v938
    %v978 = vunpack.c.l.b16 %v939
    %v979 = vunpack.c.l.b16 %v940
    %v980 = vunpack.c.l.b16 %v941
    %v981 = vunpack.c.l.b16 %v942
    %v982 = vunpack.c.l.b16 %v943
    %v983 = vunpack.c.l.b16 %v944
    %v984 = vunpack.c.l.b16 %v945
    %v985 = vunpack.c.l.b16 %v946
    %v986 = vunpack.c.l.b16 %v947
    %v987 = vpack.c.b16 %v972, %v971
    %v988 = vpack.c.b16 %v974, %v973
    %v989 = vpack.c.b16 %v976, %v975
    %v990 = vpack.c.b16 %v978, %v977
    %v991 = vpack.c.b16 %v980, %v979
    %v992 = vpack.c.b16 %v982, %v981
    %v993 = vpack.c.b16 %v984, %v983
    %v994 = vpack.c.b16 %v986, %v985
    %1003 = vmatprep.subr.bf16.mxu0 0
    %1004 = vmatpush1.bf16.msra.mxu0 %v994
    %1005 = vmatprep.subr.bf16.mxu0 0
    %1006 = vmatpush1.bf16.msra.mxu0 %v993
    %1007 = vmatprep.subr.bf16.mxu0 0
    %1008 = vmatpush1.bf16.msra.mxu0 %v992
    %1009 = vmatprep.subr.bf16.mxu0 0
    %1010 = vmatpush1.bf16.msra.mxu0 %v991
    %1011 = vmatprep.subr.bf16.mxu0 0
    %1012 = vmatpush1.bf16.msra.mxu0 %v990
    %1013 = vmatprep.subr.bf16.mxu0 0
    %1014 = vmatpush1.bf16.msra.mxu0 %v989
    %1015 = vmatprep.subr.bf16.mxu0 0
    %1016 = vmatpush1.bf16.msra.mxu0 %v988
    %1017 = vmatprep.subr.bf16.mxu0 0
    %1018 = vmatpush1.bf16.msra.mxu0 %v987
    %1019 = vmatprep.subr.bf16.mxu0 0
    %1020 = vmatpush2.bf16.msra.mxu0 0
    %1021 = vmatprep.subr.bf16.mxu0 0
    %1022 = vmatpush2.bf16.msra.mxu0 0
    %1023 = vmatprep.subr.bf16.mxu0 0
    %1024 = vmatpush2.bf16.msra.mxu0 0
    %1025 = vmatprep.subr.bf16.mxu0 0
    %1026 = vmatpush2.bf16.msra.mxu0 0
    %1027 = vmatprep.subr.bf16.mxu0 0
    %1028 = vmatpush2.bf16.msra.mxu0 0
    %1029 = vmatprep.subr.bf16.mxu0 0
    %1030 = vmatpush2.bf16.msra.mxu0 0
    %1031 = vmatprep.subr.bf16.mxu0 0
    %1032 = vmatpush2.bf16.msra.mxu0 0
    %1033 = vmatprep.subr.bf16.mxu0 0
    %1034 = vmatpush2.bf16.msra.mxu0 0
    %1035 = vmatprep.mubr.bf16.mxu0 0
    %1036 = vmatmul.mubr.bf16.gmra.mxu0 %v916
    %v1037 = vpop.f32.mrf.mxu0
    %v1038 = vadd.f32 %v953, %v1037
    %v1039 = vpop.f32.mrf.mxu0
    %v1040 = vpop.f32.mrf.mxu0
    %v1041 = vadd.f32 %v953, %v1040
    %v1042 = vpop.f32.mrf.mxu0
    %1043 = vmatprep.mubr.bf16.mxu0 0
    %1044 = vmatmul.mubr.bf16.gmra.mxu0 %v917
    %v1045 = vpop.f32.mrf.mxu0
    %v1046 = vadd.f32 %v953, %v1045
    %v1047 = vpop.f32.mrf.mxu0
    %v1048 = vpop.f32.mrf.mxu0
    %v1049 = vadd.f32 %v953, %v1048
    %v1050 = vpop.f32.mrf.mxu0
    %1051 = vmatprep.mubr.bf16.mxu0 0
    %1052 = vmatmul.mubr.bf16.gmra.mxu0 %v918
    %v1053 = vpop.f32.mrf.mxu0
    %v1054 = vadd.f32 %v953, %v1053
    %v1055 = vpop.f32.mrf.mxu0
    %v1056 = vpop.f32.mrf.mxu0
    %v1057 = vadd.f32 %v953, %v1056
    %v1058 = vpop.f32.mrf.mxu0
    %1059 = vmatprep.mubr.bf16.mxu0 0
    %1060 = vmatmul.mubr.bf16.gmra.mxu0 %v919
    %v1061 = vpop.f32.mrf.mxu0
    %v1062 = vadd.f32 %v953, %v1061
    %v1063 = vpop.f32.mrf.mxu0
    %v1064 = vpop.f32.mrf.mxu0
    %v1065 = vadd.f32 %v953, %v1064
    %v1066 = vpop.f32.mrf.mxu0
    %1067 = vmatprep.mubr.bf16.mxu0 0
    %1068 = vmatmul.mubr.bf16.gmra.mxu0 %v920
    %v1069 = vpop.f32.mrf.mxu0
    %v1070 = vadd.f32 %v953, %v1069
    %v1071 = vpop.f32.mrf.mxu0
    %v1072 = vpop.f32.mrf.mxu0
    %v1073 = vadd.f32 %v953, %v1072
    %v1074 = vpop.f32.mrf.mxu0
    %1075 = vmatprep.mubr.bf16.mxu0 0
    %1076 = vmatmul.mubr.bf16.gmra.mxu0 %v921
    %v1077 = vpop.f32.mrf.mxu0
    %v1078 = vadd.f32 %v953, %v1077
    %v1079 = vpop.f32.mrf.mxu0
    %v1080 = vpop.f32.mrf.mxu0
    %v1081 = vadd.f32 %v953, %v1080
    %v1082 = vpop.f32.mrf.mxu0
    %1083 = vmatprep.mubr.bf16.mxu0 0
    %1084 = vmatmul.mubr.bf16.gmra.mxu0 %v922
    %v1085 = vpop.f32.mrf.mxu0
    %v1086 = vadd.f32 %v953, %v1085
    %v1087 = vpop.f32.mrf.mxu0
    %v1088 = vpop.f32.mrf.mxu0
    %v1089 = vadd.f32 %v953, %v1088
    %v1090 = vpop.f32.mrf.mxu0
    %1091 = vmatprep.mubr.bf16.mxu0 0
    %1092 = vmatmul.mubr.bf16.gmra.mxu0 %v923
    %v1093 = vpop.f32.mrf.mxu0
    %v1094 = vadd.f32 %v953, %v1093
    %v1095 = vpop.f32.mrf.mxu0
    %v1096 = vpop.f32.mrf.mxu0
    %v1097 = vadd.f32 %v953, %v1096
    %v1098 = vpop.f32.mrf.mxu0
    %1099 = vmatprep.mubr.bf16.mxu0 0
    %1100 = vmatmul.mubr.bf16.gmra.mxu0 %v924
    %v1101 = vpop.f32.mrf.mxu0
    %v1102 = vadd.f32 %v953, %v1101
    %v1103 = vpop.f32.mrf.mxu0
    %v1104 = vpop.f32.mrf.mxu0
    %v1105 = vadd.f32 %v953, %v1104
    %v1106 = vpop.f32.mrf.mxu0
    %1107 = vmatprep.mubr.bf16.mxu0 0
    %1108 = vmatmul.mubr.bf16.gmra.mxu0 %v925
    %v1109 = vpop.f32.mrf.mxu0
    %v1110 = vadd.f32 %v953, %v1109
    %v1111 = vpop.f32.mrf.mxu0
    %v1112 = vpop.f32.mrf.mxu0
    %v1113 = vadd.f32 %v953, %v1112
    %v1114 = vpop.f32.mrf.mxu0
    %1115 = vmatprep.mubr.bf16.mxu0 0
    %1116 = vmatmul.mubr.bf16.gmra.mxu0 %v926
    %v1117 = vpop.f32.mrf.mxu0
    %v1118 = vadd.f32 %v953, %v1117
    %v1119 = vpop.f32.mrf.mxu0
    %v1120 = vpop.f32.mrf.mxu0
    %v1121 = vadd.f32 %v953, %v1120
    %v1122 = vpop.f32.mrf.mxu0
    %1123 = vmatprep.mubr.bf16.mxu0 0
    %1124 = vmatmul.mubr.bf16.gmra.mxu0 %v927
    %v1125 = vpop.f32.mrf.mxu0
    %v1126 = vadd.f32 %v953, %v1125
    %v1127 = vpop.f32.mrf.mxu0
    %v1128 = vpop.f32.mrf.mxu0
    %v1129 = vadd.f32 %v953, %v1128
    %v1130 = vpop.f32.mrf.mxu0
    %1131 = vmatprep.mubr.bf16.mxu0 0
    %1132 = vmatmul.mubr.bf16.gmra.mxu0 %v928
    %v1133 = vpop.f32.mrf.mxu0
    %v1134 = vadd.f32 %v953, %v1133
    %v1135 = vpop.f32.mrf.mxu0
    %v1136 = vpop.f32.mrf.mxu0
    %v1137 = vadd.f32 %v953, %v1136
    %v1138 = vpop.f32.mrf.mxu0
    %1139 = vmatprep.mubr.bf16.mxu0 0
    %1140 = vmatmul.mubr.bf16.gmra.mxu0 %v929
    %v1141 = vpop.f32.mrf.mxu0
    %v1142 = vadd.f32 %v953, %v1141
    %v1143 = vpop.f32.mrf.mxu0
    %v1144 = vpop.f32.mrf.mxu0
    %v1145 = vadd.f32 %v953, %v1144
    %v1146 = vpop.f32.mrf.mxu0
    %1147 = vmatprep.mubr.bf16.mxu0 0
    %1148 = vmatmul.mubr.bf16.gmra.mxu0 %v930
    %v1149 = vpop.f32.mrf.mxu0
    %v1150 = vadd.f32 %v953, %v1149
    %v1151 = vpop.f32.mrf.mxu0
    %v1152 = vpop.f32.mrf.mxu0
    %v1153 = vadd.f32 %v953, %v1152
    %v1154 = vpop.f32.mrf.mxu0
    %1155 = vmatprep.mubr.bf16.mxu0 0
    %1156 = vmatmul.mubr.bf16.gmra.mxu0 %v931
    %v1157 = vpop.f32.mrf.mxu0
    %v1158 = vadd.f32 %v953, %v1157
    %v1159 = vpop.f32.mrf.mxu0
    %v1160 = vpop.f32.mrf.mxu0
    %v1161 = vadd.f32 %v953, %v1160
    %v1162 = vpop.f32.mrf.mxu0
    %1163 = vdwg.mxu0
    %v1164 = vmax.f32 %v1038, 0.0
    %v1165 = vmax.f32 %v1041, 0.0
    %v1166 = vmax.f32 %v1046, 0.0
    %v1167 = vmax.f32 %v1049, 0.0
    %v1168 = vmax.f32 %v1054, 0.0
    %v1169 = vmax.f32 %v1057, 0.0
    %v1170 = vmax.f32 %v1062, 0.0
    %v1171 = vmax.f32 %v1065, 0.0
    %v1172 = vmax.f32 %v1070, 0.0
    %v1173 = vmax.f32 %v1073, 0.0
    %v1174 = vmax.f32 %v1078, 0.0
    %v1175 = vmax.f32 %v1081, 0.0
    %v1176 = vmax.f32 %v1086, 0.0
    %v1177 = vmax.f32 %v1089, 0.0
    %v1178 = vmax.f32 %v1094, 0.0
    %v1179 = vmax.f32 %v1097, 0.0
    %v1180 = vmax.f32 %v1102, 0.0
    %v1181 = vmax.f32 %v1105, 0.0
    %v1182 = vmax.f32 %v1110, 0.0
    %v1183 = vmax.f32 %v1113, 0.0
    %v1184 = vmax.f32 %v1118, 0.0
    %v1185 = vmax.f32 %v1121, 0.0
    %v1186 = vmax.f32 %v1126, 0.0
    %v1187 = vmax.f32 %v1129, 0.0
    %v1188 = vmax.f32 %v1134, 0.0
    %v1189 = vmax.f32 %v1137, 0.0
    %v1190 = vmax.f32 %v1142, 0.0
    %v1191 = vmax.f32 %v1145, 0.0
    %v1192 = vmax.f32 %v1150, 0.0
    %v1193 = vmax.f32 %v1153, 0.0
    %v1194 = vmax.f32 %v1158, 0.0
    %v1195 = vmax.f32 %v1161, 0.0
    %v1196 = vpack.c.bf16 %v1165, %v1164
    %v1197 = vpack.c.bf16 %v1167, %v1166
    %v1198 = vpack.c.bf16 %v1169, %v1168
    %v1199 = vpack.c.bf16 %v1171, %v1170
    %v1200 = vpack.c.bf16 %v1173, %v1172
    %v1201 = vpack.c.bf16 %v1175, %v1174
    %v1202 = vpack.c.bf16 %v1177, %v1176
    %v1203 = vpack.c.bf16 %v1179, %v1178
    %v1204 = vpack.c.bf16 %v1181, %v1180
    %v1205 = vpack.c.bf16 %v1183, %v1182
    %v1206 = vpack.c.bf16 %v1185, %v1184
    %v1207 = vpack.c.bf16 %v1187, %v1186
    %v1208 = vpack.c.bf16 %v1189, %v1188
    %v1209 = vpack.c.bf16 %v1191, %v1190
    %v1210 = vpack.c.bf16 %v1193, %v1192
    %v1211 = vpack.c.bf16 %v1195, %v1194
    %v1212 = vld [vmem:[%s5] sm:$0xf]
    %v1213 = vld [vmem:[%s5 + $0x4] sm:$0xf]
    %v1214 = vld [vmem:[%s5 + $0x8] sm:$0xf]
    %v1215 = vld [vmem:[%s5 + $0xc] sm:$0xf]
    %v1216 = vld [vmem:[%s5 + $0x10] sm:$0xf]
    %v1217 = vld [vmem:[%s5 + $0x14] sm:$0xf]
    %v1218 = vld [vmem:[%s5 + $0x18] sm:$0xf]
    %v1219 = vld [vmem:[%s5 + $0x1c] sm:$0xf]
    %v1220 = vld [vmem:[%s5 + $0x20] sm:$0xf]
    %v1221 = vld [vmem:[%s5 + $0x24] sm:$0xf]
    %v1222 = vld [vmem:[%s5 + $0x28] sm:$0xf]
    %v1223 = vld [vmem:[%s5 + $0x2c] sm:$0xf]
    %v1224 = vld [vmem:[%s5 + $0x30] sm:$0xf]
    %v1225 = vld [vmem:[%s5 + $0x34] sm:$0xf]
    %v1226 = vld [vmem:[%s5 + $0x38] sm:$0xf]
    %v1227 = vld [vmem:[%s5 + $0x3c] sm:$0xf]
    %v1228 = vld [vmem:[%s6] sm:$0x1]
    %v1230 = vlaneseq
    %v1231 = vshrl.u32 %v1230, 7
    %v1232 = vsub.s32 0, %v1231
    %v1233 = vrot.slane %v1228, %v1232
    %v1251 = vunpack.c.l.b16 %v1212
    %v1252 = vunpack.c.l.b16 %v1213
    %v1253 = vunpack.c.l.b16 %v1214
    %v1254 = vunpack.c.l.b16 %v1215
    %v1255 = vunpack.c.l.b16 %v1216
    %v1256 = vunpack.c.l.b16 %v1217
    %v1257 = vunpack.c.l.b16 %v1218
    %v1258 = vunpack.c.l.b16 %v1219
    %v1259 = vunpack.c.l.b16 %v1220
    %v1260 = vunpack.c.l.b16 %v1221
    %v1261 = vunpack.c.l.b16 %v1222
    %v1262 = vunpack.c.l.b16 %v1223
    %v1263 = vunpack.c.l.b16 %v1224
    %v1264 = vunpack.c.l.b16 %v1225
    %v1265 = vunpack.c.l.b16 %v1226
    %v1266 = vunpack.c.l.b16 %v1227
    %v1267 = vpack.c.b16 %v1252, %v1251
    %v1268 = vpack.c.b16 %v1254, %v1253
    %v1269 = vpack.c.b16 %v1256, %v1255
    %v1270 = vpack.c.b16 %v1258, %v1257
    %v1271 = vpack.c.b16 %v1260, %v1259
    %v1272 = vpack.c.b16 %v1262, %v1261
    %v1273 = vpack.c.b16 %v1264, %v1263
    %v1274 = vpack.c.b16 %v1266, %v1265
    %1283 = vmatprep.subr.bf16.mxu0 0
    %1284 = vmatpush1.bf16.msra.mxu0 %v1274
    %1285 = vmatprep.subr.bf16.mxu0 0
    %1286 = vmatpush1.bf16.msra.mxu0 %v1273
    %1287 = vmatprep.subr.bf16.mxu0 0
    %1288 = vmatpush1.bf16.msra.mxu0 %v1272
    %1289 = vmatprep.subr.bf16.mxu0 0
    %1290 = vmatpush1.bf16.msra.mxu0 %v1271
    %1291 = vmatprep.subr.bf16.mxu0 0
    %1292 = vmatpush1.bf16.msra.mxu0 %v1270
    %1293 = vmatprep.subr.bf16.mxu0 0
    %1294 = vmatpush1.bf16.msra.mxu0 %v1269
    %1295 = vmatprep.subr.bf16.mxu0 0
    %1296 = vmatpush1.bf16.msra.mxu0 %v1268
    %1297 = vmatprep.subr.bf16.mxu0 0
    %1298 = vmatpush1.bf16.msra.mxu0 %v1267
    %1299 = vmatprep.subr.bf16.mxu0 0
    %1300 = vmatpush2.bf16.msra.mxu0 0
    %1301 = vmatprep.subr.bf16.mxu0 0
    %1302 = vmatpush2.bf16.msra.mxu0 0
    %1303 = vmatprep.subr.bf16.mxu0 0
    %1304 = vmatpush2.bf16.msra.mxu0 0
    %1305 = vmatprep.subr.bf16.mxu0 0
    %1306 = vmatpush2.bf16.msra.mxu0 0
    %1307 = vmatprep.subr.bf16.mxu0 0
    %1308 = vmatpush2.bf16.msra.mxu0 0
    %1309 = vmatprep.subr.bf16.mxu0 0
    %1310 = vmatpush2.bf16.msra.mxu0 0
    %1311 = vmatprep.subr.bf16.mxu0 0
    %1312 = vmatpush2.bf16.msra.mxu0 0
    %1313 = vmatprep.subr.bf16.mxu0 0
    %1314 = vmatpush2.bf16.msra.mxu0 0
    %1315 = vmatprep.mubr.bf16.mxu0 0
    %1316 = vmatmul.mubr.bf16.gmra.mxu0 %v1196
    %v1317 = vpop.f32.mrf.mxu0
    %v1318 = vadd.f32 %v1233, %v1317
    %v1319 = vpop.f32.mrf.mxu0
    %v1320 = vpop.f32.mrf.mxu0
    %v1321 = vadd.f32 %v1233, %v1320
    %v1322 = vpop.f32.mrf.mxu0
    %1323 = vmatprep.mubr.bf16.mxu0 0
    %1324 = vmatmul.mubr.bf16.gmra.mxu0 %v1197
    %v1325 = vpop.f32.mrf.mxu0
    %v1326 = vadd.f32 %v1233, %v1325
    %v1327 = vpop.f32.mrf.mxu0
    %v1328 = vpop.f32.mrf.mxu0
    %v1329 = vadd.f32 %v1233, %v1328
    %v1330 = vpop.f32.mrf.mxu0
    %1331 = vmatprep.mubr.bf16.mxu0 0
    %1332 = vmatmul.mubr.bf16.gmra.mxu0 %v1198
    %v1333 = vpop.f32.mrf.mxu0
    %v1334 = vadd.f32 %v1233, %v1333
    %v1335 = vpop.f32.mrf.mxu0
    %v1336 = vpop.f32.mrf.mxu0
    %v1337 = vadd.f32 %v1233, %v1336
    %v1338 = vpop.f32.mrf.mxu0
    %1339 = vmatprep.mubr.bf16.mxu0 0
    %1340 = vmatmul.mubr.bf16.gmra.mxu0 %v1199
    %v1341 = vpop.f32.mrf.mxu0
    %v1342 = vadd.f32 %v1233, %v1341
    %v1343 = vpop.f32.mrf.mxu0
    %v1344 = vpop.f32.mrf.mxu0
    %v1345 = vadd.f32 %v1233, %v1344
    %v1346 = vpop.f32.mrf.mxu0
    %1347 = vmatprep.mubr.bf16.mxu0 0
    %1348 = vmatmul.mubr.bf16.gmra.mxu0 %v1200
    %v1349 = vpop.f32.mrf.mxu0
    %v1350 = vadd.f32 %v1233, %v1349
    %v1351 = vpop.f32.mrf.mxu0
    %v1352 = vpop.f32.mrf.mxu0
    %v1353 = vadd.f32 %v1233, %v1352
    %v1354 = vpop.f32.mrf.mxu0
    %1355 = vmatprep.mubr.bf16.mxu0 0
    %1356 = vmatmul.mubr.bf16.gmra.mxu0 %v1201
    %v1357 = vpop.f32.mrf.mxu0
    %v1358 = vadd.f32 %v1233, %v1357
    %v1359 = vpop.f32.mrf.mxu0
    %v1360 = vpop.f32.mrf.mxu0
    %v1361 = vadd.f32 %v1233, %v1360
    %v1362 = vpop.f32.mrf.mxu0
    %1363 = vmatprep.mubr.bf16.mxu0 0
    %1364 = vmatmul.mubr.bf16.gmra.mxu0 %v1202
    %v1365 = vpop.f32.mrf.mxu0
    %v1366 = vadd.f32 %v1233, %v1365
    %v1367 = vpop.f32.mrf.mxu0
    %v1368 = vpop.f32.mrf.mxu0
    %v1369 = vadd.f32 %v1233, %v1368
    %v1370 = vpop.f32.mrf.mxu0
    %1371 = vmatprep.mubr.bf16.mxu0 0
    %1372 = vmatmul.mubr.bf16.gmra.mxu0 %v1203
    %v1373 = vpop.f32.mrf.mxu0
    %v1374 = vadd.f32 %v1233, %v1373
    %v1375 = vpop.f32.mrf.mxu0
    %v1376 = vpop.f32.mrf.mxu0
    %v1377 = vadd.f32 %v1233, %v1376
    %v1378 = vpop.f32.mrf.mxu0
    %1379 = vmatprep.mubr.bf16.mxu0 0
    %1380 = vmatmul.mubr.bf16.gmra.mxu0 %v1204
    %v1381 = vpop.f32.mrf.mxu0
    %v1382 = vadd.f32 %v1233, %v1381
    %v1383 = vpop.f32.mrf.mxu0
    %v1384 = vpop.f32.mrf.mxu0
    %v1385 = vadd.f32 %v1233, %v1384
    %v1386 = vpop.f32.mrf.mxu0
    %1387 = vmatprep.mubr.bf16.mxu0 0
    %1388 = vmatmul.mubr.bf16.gmra.mxu0 %v1205
    %v1389 = vpop.f32.mrf.mxu0
    %v1390 = vadd.f32 %v1233, %v1389
    %v1391 = vpop.f32.mrf.mxu0
    %v1392 = vpop.f32.mrf.mxu0
    %v1393 = vadd.f32 %v1233, %v1392
    %v1394 = vpop.f32.mrf.mxu0
    %1395 = vmatprep.mubr.bf16.mxu0 0
    %1396 = vmatmul.mubr.bf16.gmra.mxu0 %v1206
    %v1397 = vpop.f32.mrf.mxu0
    %v1398 = vadd.f32 %v1233, %v1397
    %v1399 = vpop.f32.mrf.mxu0
    %v1400 = vpop.f32.mrf.mxu0
    %v1401 = vadd.f32 %v1233, %v1400
    %v1402 = vpop.f32.mrf.mxu0
    %1403 = vmatprep.mubr.bf16.mxu0 0
    %1404 = vmatmul.mubr.bf16.gmra.mxu0 %v1207
    %v1405 = vpop.f32.mrf.mxu0
    %v1406 = vadd.f32 %v1233, %v1405
    %v1407 = vpop.f32.mrf.mxu0
    %v1408 = vpop.f32.mrf.mxu0
    %v1409 = vadd.f32 %v1233, %v1408
    %v1410 = vpop.f32.mrf.mxu0
    %1411 = vmatprep.mubr.bf16.mxu0 0
    %1412 = vmatmul.mubr.bf16.gmra.mxu0 %v1208
    %v1413 = vpop.f32.mrf.mxu0
    %v1414 = vadd.f32 %v1233, %v1413
    %v1415 = vpop.f32.mrf.mxu0
    %v1416 = vpop.f32.mrf.mxu0
    %v1417 = vadd.f32 %v1233, %v1416
    %v1418 = vpop.f32.mrf.mxu0
    %1419 = vmatprep.mubr.bf16.mxu0 0
    %1420 = vmatmul.mubr.bf16.gmra.mxu0 %v1209
    %v1421 = vpop.f32.mrf.mxu0
    %v1422 = vadd.f32 %v1233, %v1421
    %v1423 = vpop.f32.mrf.mxu0
    %v1424 = vpop.f32.mrf.mxu0
    %v1425 = vadd.f32 %v1233, %v1424
    %v1426 = vpop.f32.mrf.mxu0
    %1427 = vmatprep.mubr.bf16.mxu0 0
    %1428 = vmatmul.mubr.bf16.gmra.mxu0 %v1210
    %v1429 = vpop.f32.mrf.mxu0
    %v1430 = vadd.f32 %v1233, %v1429
    %v1431 = vpop.f32.mrf.mxu0
    %v1432 = vpop.f32.mrf.mxu0
    %v1433 = vadd.f32 %v1233, %v1432
    %v1434 = vpop.f32.mrf.mxu0
    %1435 = vmatprep.mubr.bf16.mxu0 0
    %1436 = vmatmul.mubr.bf16.gmra.mxu0 %v1211
    %v1437 = vpop.f32.mrf.mxu0
    %v1438 = vadd.f32 %v1233, %v1437
    %v1439 = vpop.f32.mrf.mxu0
    %v1440 = vpop.f32.mrf.mxu0
    %v1441 = vadd.f32 %v1233, %v1440
    %v1442 = vpop.f32.mrf.mxu0
    %1443 = vdwg.mxu0
    %v1444 = vpack.c.bf16 %v1321, %v1318
    %v1445 = vpack.c.bf16 %v1329, %v1326
    %v1446 = vpack.c.bf16 %v1337, %v1334
    %v1447 = vpack.c.bf16 %v1345, %v1342
    %v1448 = vpack.c.bf16 %v1353, %v1350
    %v1449 = vpack.c.bf16 %v1361, %v1358
    %v1450 = vpack.c.bf16 %v1369, %v1366
    %v1451 = vpack.c.bf16 %v1377, %v1374
    %v1452 = vpack.c.bf16 %v1385, %v1382
    %v1453 = vpack.c.bf16 %v1393, %v1390
    %v1454 = vpack.c.bf16 %v1401, %v1398
    %v1455 = vpack.c.bf16 %v1409, %v1406
    %v1456 = vpack.c.bf16 %v1417, %v1414
    %v1457 = vpack.c.bf16 %v1425, %v1422
    %v1458 = vpack.c.bf16 %v1433, %v1430
    %v1459 = vpack.c.bf16 %v1441, %v1438
    %v1476 = vunpack.c.l.b16 %v1444
    %v1477 = vunpack.c.h.b16 %v1444
    %v1478 = vunpack.c.l.b16 %v1445
    %v1479 = vunpack.c.h.b16 %v1445
    %v1480 = vunpack.c.l.b16 %v1446
    %v1481 = vunpack.c.h.b16 %v1446
    %v1482 = vunpack.c.l.b16 %v1447
    %v1483 = vunpack.c.h.b16 %v1447
    %v1484 = vunpack.c.l.b16 %v1448
    %v1485 = vunpack.c.h.b16 %v1448
    %v1486 = vunpack.c.l.b16 %v1449
    %v1487 = vunpack.c.h.b16 %v1449
    %v1488 = vunpack.c.l.b16 %v1450
    %v1489 = vunpack.c.h.b16 %v1450
    %v1490 = vunpack.c.l.b16 %v1451
    %v1491 = vunpack.c.h.b16 %v1451
    %v1492 = vunpack.c.l.b16 %v1452
    %v1493 = vunpack.c.h.b16 %v1452
    %v1494 = vunpack.c.l.b16 %v1453
    %v1495 = vunpack.c.h.b16 %v1453
    %v1496 = vunpack.c.l.b16 %v1454
    %v1497 = vunpack.c.h.b16 %v1454
    %v1498 = vunpack.c.l.b16 %v1455
    %v1499 = vunpack.c.h.b16 %v1455
    %v1500 = vunpack.c.l.b16 %v1456
    %v1501 = vunpack.c.h.b16 %v1456
    %v1502 = vunpack.c.l.b16 %v1457
    %v1503 = vunpack.c.h.b16 %v1457
    %v1504 = vunpack.c.l.b16 %v1458
    %v1505 = vunpack.c.h.b16 %v1458
    %v1506 = vunpack.c.l.b16 %v1459
    %v1507 = vunpack.c.h.b16 %v1459
    %v1508 = vpack.c.b16 %v1476, %v1476
    %v1509 = vpack.c.b16 %v1477, %v1477
    %v1510 = vpack.c.b16 %v1478, %v1478
    %v1511 = vpack.c.b16 %v1479, %v1479
    %v1512 = vpack.c.b16 %v1480, %v1480
    %v1513 = vpack.c.b16 %v1481, %v1481
    %v1514 = vpack.c.b16 %v1482, %v1482
    %v1515 = vpack.c.b16 %v1483, %v1483
    %v1516 = vpack.c.b16 %v1484, %v1484
    %v1517 = vpack.c.b16 %v1485, %v1485
    %v1518 = vpack.c.b16 %v1486, %v1486
    %v1519 = vpack.c.b16 %v1487, %v1487
    %v1520 = vpack.c.b16 %v1488, %v1488
    %v1521 = vpack.c.b16 %v1489, %v1489
    %v1522 = vpack.c.b16 %v1490, %v1490
    %v1523 = vpack.c.b16 %v1491, %v1491
    %v1524 = vpack.c.b16 %v1492, %v1492
    %v1525 = vpack.c.b16 %v1493, %v1493
    %v1526 = vpack.c.b16 %v1494, %v1494
    %v1527 = vpack.c.b16 %v1495, %v1495
    %v1528 = vpack.c.b16 %v1496, %v1496
    %v1529 = vpack.c.b16 %v1497, %v1497
    %v1530 = vpack.c.b16 %v1498, %v1498
    %v1531 = vpack.c.b16 %v1499, %v1499
    %v1532 = vpack.c.b16 %v1500, %v1500
    %v1533 = vpack.c.b16 %v1501, %v1501
    %v1534 = vpack.c.b16 %v1502, %v1502
    %v1535 = vpack.c.b16 %v1503, %v1503
    %v1536 = vpack.c.b16 %v1504, %v1504
    %v1537 = vpack.c.b16 %v1505, %v1505
    %v1538 = vpack.c.b16 %v1506, %v1506
    %v1539 = vpack.c.b16 %v1507, %v1507
    %1572 = vst [vmem:[#allocation2] sm:$0xf] %v1508
    %1573 = vst [vmem:[#allocation2 + $0x4] sm:$0xf] %v1509
    %1574 = vst [vmem:[#allocation2 + $0x8] sm:$0xf] %v1510
    %1575 = vst [vmem:[#allocation2 + $0xc] sm:$0xf] %v1511
    %1576 = vst [vmem:[#allocation2 + $0x10] sm:$0xf] %v1512
    %1577 = vst [vmem:[#allocation2 + $0x14] sm:$0xf] %v1513
    %1578 = vst [vmem:[#allocation2 + $0x18] sm:$0xf] %v1514
    %1579 = vst [vmem:[#allocation2 + $0x1c] sm:$0xf] %v1515
    %1580 = vst [vmem:[#allocation2 + $0x20] sm:$0xf] %v1516
    %1581 = vst [vmem:[#allocation2 + $0x24] sm:$0xf] %v1517
    %1582 = vst [vmem:[#allocation2 + $0x28] sm:$0xf] %v1518
    %1583 = vst [vmem:[#allocation2 + $0x2c] sm:$0xf] %v1519
    %1584 = vst [vmem:[#allocation2 + $0x30] sm:$0xf] %v1520
    %1585 = vst [vmem:[#allocation2 + $0x34] sm:$0xf] %v1521
    %1586 = vst [vmem:[#allocation2 + $0x38] sm:$0xf] %v1522
    %1587 = vst [vmem:[#allocation2 + $0x3c] sm:$0xf] %v1523
    %1588 = vst [vmem:[#allocation2 + $0x40] sm:$0xf] %v1524
    %1589 = vst [vmem:[#allocation2 + $0x44] sm:$0xf] %v1525
    %1590 = vst [vmem:[#allocation2 + $0x48] sm:$0xf] %v1526
    %1591 = vst [vmem:[#allocation2 + $0x4c] sm:$0xf] %v1527
    %1592 = vst [vmem:[#allocation2 + $0x50] sm:$0xf] %v1528
    %1593 = vst [vmem:[#allocation2 + $0x54] sm:$0xf] %v1529
    %1594 = vst [vmem:[#allocation2 + $0x58] sm:$0xf] %v1530
    %1595 = vst [vmem:[#allocation2 + $0x5c] sm:$0xf] %v1531
    %1596 = vst [vmem:[#allocation2 + $0x60] sm:$0xf] %v1532
    %1597 = vst [vmem:[#allocation2 + $0x64] sm:$0xf] %v1533
    %1598 = vst [vmem:[#allocation2 + $0x68] sm:$0xf] %v1534
    %1599 = vst [vmem:[#allocation2 + $0x6c] sm:$0xf] %v1535
    %1600 = vst [vmem:[#allocation2 + $0x70] sm:$0xf] %v1536
    %1601 = vst [vmem:[#allocation2 + $0x74] sm:$0xf] %v1537
    %1602 = vst [vmem:[#allocation2 + $0x78] sm:$0xf] %v1538
    %1603 = vst [vmem:[#allocation2 + $0x7c] sm:$0xf] %v1539
    // Predicated region
    $region30: #{tpu_custom_call.1} parent=1 // pred_check
      _
    $region31: #{tpu_custom_call.1} parent=1 // pred_check_branch
      %1605 = sbr.rel (0) target = $region33
    $region32: #{tpu_custom_call.1} parent=1 // pred_region
      %s1607 = ssub.s32 2048, 2048
      %1608 = vsyncadd [#allocation3], %s1607
      %s1609 = sshll.u32 [#allocation2], 4
      %s1610 = int_to_ptr.vmem [resolvable:$true] %s1609
      %1615 = dma.vmem_to_hbm [thread:$0]  %s1610, 2048, %s7, [#allocation3], 64, 64, 4
    $region33: #{tpu_custom_call.1} parent=1 // pred_fallthru
      _
    // Predicated region
    $region34: #{tpu_custom_call.1} parent=1 // pred_check
      _
    $region35: #{tpu_custom_call.1} parent=1 // pred_check_branch
      %1617 = sbr.rel (0) target = $region37
    $region36: #{tpu_custom_call.1} parent=1 // pred_region
      %1618 = dma.done [#allocation3], 2048
    $region37: #{tpu_custom_call.1} parent=1 // pred_fallthru
      _
    %1619 = vsyncpa [#allocation3], 1

// kernel: tpu_custom_call.1
$region0: #{tpu_custom_call.1}
  #allocation0 [shape = 'u32[]', space=smem, size = 0x4, offset = 0x4, fixed_abs, tag = 'smem constant byte address 0x4 - core index']
  #allocation1 [shape = 'u32[144,128]{1,0:T(1,128)}', space=vmem, size = 0x12000, scoped, tag = 'internal scratch']
  %s0 = inlined_call_operand.vmem [shape: f32[256,4], index: 0, kind: input, shape index: {}]
  %s1 = inlined_call_operand.vmem [shape: f32[4,128], index: 1, kind: input, shape index: {}]
  %s2 = inlined_call_operand.vmem [shape: f32[1,128], index: 2, kind: input, shape index: {}]
  %s3 = inlined_call_operand.vmem [shape: bf16[128,128], index: 3, kind: input, shape index: {}]
  %s4 = inlined_call_operand.vmem [shape: f32[1,128], index: 4, kind: input, shape index: {}]
  %s5 = inlined_call_operand.vmem [shape: bf16[128,128], index: 5, kind: input, shape index: {}]
  %s6 = inlined_call_operand.vmem [shape: f32[1,128], index: 6, kind: input, shape index: {}]
  %s7 = inlined_call_operand.hbm [shape: bf16[256,128], index: 7, kind: output, shape index: {}]
  %s8 = sld [smem:[#allocation0]]
  $region38: #{tpu_custom_call.1} parent=0
    _
  %s10 = ssub.s32 1, %s8
  %s11 = scalar_select 0, %s10, %s8
  $region1: #{tpu_custom_call.1} parent=0
    #allocation2 [shape = 'u8[65536]{0}', space=vmem, size = 0x10000, scoped, tag = 'output window, operand 0, single buffered']
    #allocation3 [shape = 's32[1]{0}', space=sflag, size = 0x4, scoped, tag = 'scoped memory for tpu_custom_call.1']
    %12 = vsyncpa [#allocation3], 0
    // Predicated region
    $region2: #{tpu_custom_call.1} parent=1 // pred_check
      _
    $region3: #{tpu_custom_call.1} parent=1 // pred_check_branch
      %14 = sbr.rel (0) target = $region5
    $region4: #{tpu_custom_call.1} parent=1 // pred_region
      _
    $region5: #{tpu_custom_call.1} parent=1 // pred_fallthru
      _
    // Predicated region
    $region6: #{tpu_custom_call.1} parent=1 // pred_check
      _
    $region7: #{tpu_custom_call.1} parent=1 // pred_check_branch
      %16 = sbr.rel (0) target = $region9
    $region8: #{tpu_custom_call.1} parent=1 // pred_region
      _
    $region9: #{tpu_custom_call.1} parent=1 // pred_fallthru
      _
    // Predicated region
    $region10: #{tpu_custom_call.1} parent=1 // pred_check
      _
    $region11: #{tpu_custom_call.1} parent=1 // pred_check_branch
      %18 = sbr.rel (0) target = $region13
    $region12: #{tpu_custom_call.1} parent=1 // pred_region
      _
    $region13: #{tpu_custom_call.1} parent=1 // pred_fallthru
      _
    // Predicated region
    $region14: #{tpu_custom_call.1} parent=1 // pred_check
      _
    $region15: #{tpu_custom_call.1} parent=1 // pred_check_branch
      %20 = sbr.rel (0) target = $region17
    $region16: #{tpu_custom_call.1} parent=1 // pred_region
      _
    $region17: #{tpu_custom_call.1} parent=1 // pred_fallthru
      _
    // Predicated region
    $region18: #{tpu_custom_call.1} parent=1 // pred_check
      _
    $region19: #{tpu_custom_call.1} parent=1 // pred_check_branch
      %22 = sbr.rel (0) target = $region21
    $region20: #{tpu_custom_call.1} parent=1 // pred_region
      _
    $region21: #{tpu_custom_call.1} parent=1 // pred_fallthru
      _
    // Predicated region
    $region22: #{tpu_custom_call.1} parent=1 // pred_check
      _
    $region23: #{tpu_custom_call.1} parent=1 // pred_check_branch
      %24 = sbr.rel (0) target = $region25
    $region24: #{tpu_custom_call.1} parent=1 // pred_region
      _
    $region25: #{tpu_custom_call.1} parent=1 // pred_fallthru
      _
    // Predicated region
    $region26: #{tpu_custom_call.1} parent=1 // pred_check
      _
    $region27: #{tpu_custom_call.1} parent=1 // pred_check_branch
      %26 = sbr.rel (0) target = $region29
    $region28: #{tpu_custom_call.1} parent=1 // pred_region
      _
    $region29: #{tpu_custom_call.1} parent=1 // pred_fallthru
      _
    %v28 = vld [vmem:[%s0] sm:$0xff]
    %v29 = vld [vmem:[%s0 + $0x8] sm:$0xff]
    %v30 = vld [vmem:[%s0 + $0x10] sm:$0xff]
    %v31 = vld [vmem:[%s0 + $0x18] sm:$0xff]
    %v32 = vld [vmem:[%s0 + $0x20] sm:$0xff]
    %v33 = vld [vmem:[%s0 + $0x28] sm:$0xff]
    %v34 = vld [vmem:[%s0 + $0x30] sm:$0xff]
    %v35 = vld [vmem:[%s0 + $0x38] sm:$0xff]
    %v36 = vld [vmem:[%s0 + $0x40] sm:$0xff]
    %v37 = vld [vmem:[%s0 + $0x48] sm:$0xff]
    %v38 = vld [vmem:[%s0 + $0x50] sm:$0xff]
    %v39 = vld [vmem:[%s0 + $0x58] sm:$0xff]
    %v40 = vld [vmem:[%s0 + $0x60] sm:$0xff]
    %v41 = vld [vmem:[%s0 + $0x68] sm:$0xff]
    %v42 = vld [vmem:[%s0 + $0x70] sm:$0xff]
    %v43 = vld [vmem:[%s0 + $0x78] sm:$0xff]
    %v44 = vld [vmem:[%s0 + $0x80] sm:$0xff]
    %v45 = vld [vmem:[%s0 + $0x88] sm:$0xff]
    %v46 = vld [vmem:[%s0 + $0x90] sm:$0xff]
    %v47 = vld [vmem:[%s0 + $0x98] sm:$0xff]
    %v48 = vld [vmem:[%s0 + $0xa0] sm:$0xff]
    %v49 = vld [vmem:[%s0 + $0xa8] sm:$0xff]
    %v50 = vld [vmem:[%s0 + $0xb0] sm:$0xff]
    %v51 = vld [vmem:[%s0 + $0xb8] sm:$0xff]
    %v52 = vld [vmem:[%s0 + $0xc0] sm:$0xff]
    %v53 = vld [vmem:[%s0 + $0xc8] sm:$0xff]
    %v54 = vld [vmem:[%s0 + $0xd0] sm:$0xff]
    %v55 = vld [vmem:[%s0 + $0xd8] sm:$0xff]
    %v56 = vld [vmem:[%s0 + $0xe0] sm:$0xff]
    %v57 = vld [vmem:[%s0 + $0xe8] sm:$0xff]
    %v58 = vld [vmem:[%s0 + $0xf0] sm:$0xff]
    %v59 = vld [vmem:[%s0 + $0xf8] sm:$0xff]
    %v60 = vld [vmem:[%s1] sm:$0xf]
    %v61 = vld [vmem:[%s2] sm:$0x1]
    %63 = vset.pattern.permute.xlu0 0
    %64 = vperm.xlu0 %63, %v28
    %v65 = vpop.permute.xlu0 %64
    %68 = vset.pattern.permute.xlu0 0
    %69 = vperm.xlu0 %68, %v29
    %v70 = vpop.permute.xlu0 %69
    %73 = vset.pattern.permute.xlu0 0
    %74 = vperm.xlu0 %73, %v30
    %v75 = vpop.permute.xlu0 %74
    %78 = vset.pattern.permute.xlu0 0
    %79 = vperm.xlu0 %78, %v31
    %v80 = vpop.permute.xlu0 %79
    %83 = vset.pattern.permute.xlu0 0
    %84 = vperm.xlu0 %83, %v32
    %v85 = vpop.permute.xlu0 %84
    %88 = vset.pattern.permute.xlu0 0
    %89 = vperm.xlu0 %88, %v33
    %v90 = vpop.permute.xlu0 %89
    %93 = vset.pattern.permute.xlu0 0
    %94 = vperm.xlu0 %93, %v34
    %v95 = vpop.permute.xlu0 %94
    %98 = vset.pattern.permute.xlu0 0
    %99 = vperm.xlu0 %98, %v35
    %v100 = vpop.permute.xlu0 %99
    %103 = vset.pattern.permute.xlu0 0
    %104 = vperm.xlu0 %103, %v36
    %v105 = vpop.permute.xlu0 %104
    %108 = vset.pattern.permute.xlu0 0
    %109 = vperm.xlu0 %108, %v37
    %v110 = vpop.permute.xlu0 %109
    %113 = vset.pattern.permute.xlu0 0
    %114 = vperm.xlu0 %113, %v38
    %v115 = vpop.permute.xlu0 %114
    %118 = vset.pattern.permute.xlu0 0
    %119 = vperm.xlu0 %118, %v39
    %v120 = vpop.permute.xlu0 %119
    %123 = vset.pattern.permute.xlu0 0
    %124 = vperm.xlu0 %123, %v40
    %v125 = vpop.permute.xlu0 %124
    %128 = vset.pattern.permute.xlu0 0
    %129 = vperm.xlu0 %128, %v41
    %v130 = vpop.permute.xlu0 %129
    %133 = vset.pattern.permute.xlu0 0
    %134 = vperm.xlu0 %133, %v42
    %v135 = vpop.permute.xlu0 %134
    %138 = vset.pattern.permute.xlu0 0
    %139 = vperm.xlu0 %138, %v43
    %v140 = vpop.permute.xlu0 %139
    %143 = vset.pattern.permute.xlu0 0
    %144 = vperm.xlu0 %143, %v44
    %v145 = vpop.permute.xlu0 %144
    %148 = vset.pattern.permute.xlu0 0
    %149 = vperm.xlu0 %148, %v45
    %v150 = vpop.permute.xlu0 %149
    %153 = vset.pattern.permute.xlu0 0
    %154 = vperm.xlu0 %153, %v46
    %v155 = vpop.permute.xlu0 %154
    %158 = vset.pattern.permute.xlu0 0
    %159 = vperm.xlu0 %158, %v47
    %v160 = vpop.permute.xlu0 %159
    %163 = vset.pattern.permute.xlu0 0
    %164 = vperm.xlu0 %163, %v48
    %v165 = vpop.permute.xlu0 %164
    %168 = vset.pattern.permute.xlu0 0
    %169 = vperm.xlu0 %168, %v49
    %v170 = vpop.permute.xlu0 %169
    %173 = vset.pattern.permute.xlu0 0
    %174 = vperm.xlu0 %173, %v50
    %v175 = vpop.permute.xlu0 %174
    %178 = vset.pattern.permute.xlu0 0
    %179 = vperm.xlu0 %178, %v51
    %v180 = vpop.permute.xlu0 %179
    %183 = vset.pattern.permute.xlu0 0
    %184 = vperm.xlu0 %183, %v52
    %v185 = vpop.permute.xlu0 %184
    %188 = vset.pattern.permute.xlu0 0
    %189 = vperm.xlu0 %188, %v53
    %v190 = vpop.permute.xlu0 %189
    %193 = vset.pattern.permute.xlu0 0
    %194 = vperm.xlu0 %193, %v54
    %v195 = vpop.permute.xlu0 %194
    %198 = vset.pattern.permute.xlu0 0
    %199 = vperm.xlu0 %198, %v55
    %v200 = vpop.permute.xlu0 %199
    %203 = vset.pattern.permute.xlu0 0
    %204 = vperm.xlu0 %203, %v56
    %v205 = vpop.permute.xlu0 %204
    %208 = vset.pattern.permute.xlu0 0
    %209 = vperm.xlu0 %208, %v57
    %v210 = vpop.permute.xlu0 %209
    %213 = vset.pattern.permute.xlu0 0
    %214 = vperm.xlu0 %213, %v58
    %v215 = vpop.permute.xlu0 %214
    %218 = vset.pattern.permute.xlu0 0
    %219 = vperm.xlu0 %218, %v59
    %v220 = vpop.permute.xlu0 %219
    %v222 = vlaneseq
    %v223 = vshrl.u32 %v222, 7
    %v224 = vsub.s32 0, %v223
    %v225 = vrot.slane %v60, %v224
    %v226 = vmul.f32 %v65, %v225
    %v227 = vmul.f32 %v70, %v225
    %v228 = vmul.f32 %v75, %v225
    %v229 = vmul.f32 %v80, %v225
    %v230 = vmul.f32 %v85, %v225
    %v231 = vmul.f32 %v90, %v225
    %v232 = vmul.f32 %v95, %v225
    %v233 = vmul.f32 %v100, %v225
    %v234 = vmul.f32 %v105, %v225
    %v235 = vmul.f32 %v110, %v225
    %v236 = vmul.f32 %v115, %v225
    %v237 = vmul.f32 %v120, %v225
    %v238 = vmul.f32 %v125, %v225
    %v239 = vmul.f32 %v130, %v225
    %v240 = vmul.f32 %v135, %v225
    %v241 = vmul.f32 %v140, %v225
    %v242 = vmul.f32 %v145, %v225
    %v243 = vmul.f32 %v150, %v225
    %v244 = vmul.f32 %v155, %v225
    %v245 = vmul.f32 %v160, %v225
    %v246 = vmul.f32 %v165, %v225
    %v247 = vmul.f32 %v170, %v225
    %v248 = vmul.f32 %v175, %v225
    %v249 = vmul.f32 %v180, %v225
    %v250 = vmul.f32 %v185, %v225
    %v251 = vmul.f32 %v190, %v225
    %v252 = vmul.f32 %v195, %v225
    %v253 = vmul.f32 %v200, %v225
    %v254 = vmul.f32 %v205, %v225
    %v255 = vmul.f32 %v210, %v225
    %v256 = vmul.f32 %v215, %v225
    %v257 = vmul.f32 %v220, %v225
    %v259 = vlaneseq
    %v260 = vshrl.u32 %v259, 7
    %v261 = vsub.s32 0, %v260
    %v262 = vrot.slane %v61, %v261
    %v264 = vadd.f32 %v262, %v226
    %v265 = vadd.f32 %v262, %v227
    %v266 = vadd.f32 %v262, %v228
    %v267 = vadd.f32 %v262, %v229
    %v268 = vadd.f32 %v262, %v230
    %v269 = vadd.f32 %v262, %v231
    %v270 = vadd.f32 %v262, %v232
    %v271 = vadd.f32 %v262, %v233
    %v272 = vadd.f32 %v262, %v234
    %v273 = vadd.f32 %v262, %v235
    %v274 = vadd.f32 %v262, %v236
    %v275 = vadd.f32 %v262, %v237
    %v276 = vadd.f32 %v262, %v238
    %v277 = vadd.f32 %v262, %v239
    %v278 = vadd.f32 %v262, %v240
    %v279 = vadd.f32 %v262, %v241
    %v280 = vadd.f32 %v262, %v242
    %v281 = vadd.f32 %v262, %v243
    %v282 = vadd.f32 %v262, %v244
    %v283 = vadd.f32 %v262, %v245
    %v284 = vadd.f32 %v262, %v246
    %v285 = vadd.f32 %v262, %v247
    %v286 = vadd.f32 %v262, %v248
    %v287 = vadd.f32 %v262, %v249
    %v288 = vadd.f32 %v262, %v250
    %v289 = vadd.f32 %v262, %v251
    %v290 = vadd.f32 %v262, %v252
    %v291 = vadd.f32 %v262, %v253
    %v292 = vadd.f32 %v262, %v254
    %v293 = vadd.f32 %v262, %v255
    %v294 = vadd.f32 %v262, %v256
    %v295 = vadd.f32 %v262, %v257
    %296 = vset.pattern.permute.xlu0 1
    %297 = vperm.xlu0 %296, %v28
    %v298 = vpop.permute.xlu0 %297
    %300 = vset.pattern.permute.xlu0 1
    %301 = vperm.xlu0 %300, %v29
    %v302 = vpop.permute.xlu0 %301
    %304 = vset.pattern.permute.xlu0 1
    %305 = vperm.xlu0 %304, %v30
    %v306 = vpop.permute.xlu0 %305
    %308 = vset.pattern.permute.xlu0 1
    %309 = vperm.xlu0 %308, %v31
    %v310 = vpop.permute.xlu0 %309
    %312 = vset.pattern.permute.xlu0 1
    %313 = vperm.xlu0 %312, %v32
    %v314 = vpop.permute.xlu0 %313
    %316 = vset.pattern.permute.xlu0 1
    %317 = vperm.xlu0 %316, %v33
    %v318 = vpop.permute.xlu0 %317
    %320 = vset.pattern.permute.xlu0 1
    %321 = vperm.xlu0 %320, %v34
    %v322 = vpop.permute.xlu0 %321
    %324 = vset.pattern.permute.xlu0 1
    %325 = vperm.xlu0 %324, %v35
    %v326 = vpop.permute.xlu0 %325
    %328 = vset.pattern.permute.xlu0 1
    %329 = vperm.xlu0 %328, %v36
    %v330 = vpop.permute.xlu0 %329
    %332 = vset.pattern.permute.xlu0 1
    %333 = vperm.xlu0 %332, %v37
    %v334 = vpop.permute.xlu0 %333
    %336 = vset.pattern.permute.xlu0 1
    %337 = vperm.xlu0 %336, %v38
    %v338 = vpop.permute.xlu0 %337
    %340 = vset.pattern.permute.xlu0 1
    %341 = vperm.xlu0 %340, %v39
    %v342 = vpop.permute.xlu0 %341
    %344 = vset.pattern.permute.xlu0 1
    %345 = vperm.xlu0 %344, %v40
    %v346 = vpop.permute.xlu0 %345
    %348 = vset.pattern.permute.xlu0 1
    %349 = vperm.xlu0 %348, %v41
    %v350 = vpop.permute.xlu0 %349
    %352 = vset.pattern.permute.xlu0 1
    %353 = vperm.xlu0 %352, %v42
    %v354 = vpop.permute.xlu0 %353
    %356 = vset.pattern.permute.xlu0 1
    %357 = vperm.xlu0 %356, %v43
    %v358 = vpop.permute.xlu0 %357
    %360 = vset.pattern.permute.xlu0 1
    %361 = vperm.xlu0 %360, %v44
    %v362 = vpop.permute.xlu0 %361
    %364 = vset.pattern.permute.xlu0 1
    %365 = vperm.xlu0 %364, %v45
    %v366 = vpop.permute.xlu0 %365
    %368 = vset.pattern.permute.xlu0 1
    %369 = vperm.xlu0 %368, %v46
    %v370 = vpop.permute.xlu0 %369
    %372 = vset.pattern.permute.xlu0 1
    %373 = vperm.xlu0 %372, %v47
    %v374 = vpop.permute.xlu0 %373
    %376 = vset.pattern.permute.xlu0 1
    %377 = vperm.xlu0 %376, %v48
    %v378 = vpop.permute.xlu0 %377
    %380 = vset.pattern.permute.xlu0 1
    %381 = vperm.xlu0 %380, %v49
    %v382 = vpop.permute.xlu0 %381
    %384 = vset.pattern.permute.xlu0 1
    %385 = vperm.xlu0 %384, %v50
    %v386 = vpop.permute.xlu0 %385
    %388 = vset.pattern.permute.xlu0 1
    %389 = vperm.xlu0 %388, %v51
    %v390 = vpop.permute.xlu0 %389
    %392 = vset.pattern.permute.xlu0 1
    %393 = vperm.xlu0 %392, %v52
    %v394 = vpop.permute.xlu0 %393
    %396 = vset.pattern.permute.xlu0 1
    %397 = vperm.xlu0 %396, %v53
    %v398 = vpop.permute.xlu0 %397
    %400 = vset.pattern.permute.xlu0 1
    %401 = vperm.xlu0 %400, %v54
    %v402 = vpop.permute.xlu0 %401
    %404 = vset.pattern.permute.xlu0 1
    %405 = vperm.xlu0 %404, %v55
    %v406 = vpop.permute.xlu0 %405
    %408 = vset.pattern.permute.xlu0 1
    %409 = vperm.xlu0 %408, %v56
    %v410 = vpop.permute.xlu0 %409
    %412 = vset.pattern.permute.xlu0 1
    %413 = vperm.xlu0 %412, %v57
    %v414 = vpop.permute.xlu0 %413
    %416 = vset.pattern.permute.xlu0 1
    %417 = vperm.xlu0 %416, %v58
    %v418 = vpop.permute.xlu0 %417
    %420 = vset.pattern.permute.xlu0 1
    %421 = vperm.xlu0 %420, %v59
    %v422 = vpop.permute.xlu0 %421
    %v424 = vlaneseq
    %v425 = vshrl.u32 %v424, 7
    %v426 = vsub.s32 1, %v425
    %v427 = vrot.slane %v60, %v426
    %v428 = vmul.f32 %v298, %v427
    %v429 = vmul.f32 %v302, %v427
    %v430 = vmul.f32 %v306, %v427
    %v431 = vmul.f32 %v310, %v427
    %v432 = vmul.f32 %v314, %v427
    %v433 = vmul.f32 %v318, %v427
    %v434 = vmul.f32 %v322, %v427
    %v435 = vmul.f32 %v326, %v427
    %v436 = vmul.f32 %v330, %v427
    %v437 = vmul.f32 %v334, %v427
    %v438 = vmul.f32 %v338, %v427
    %v439 = vmul.f32 %v342, %v427
    %v440 = vmul.f32 %v346, %v427
    %v441 = vmul.f32 %v350, %v427
    %v442 = vmul.f32 %v354, %v427
    %v443 = vmul.f32 %v358, %v427
    %v444 = vmul.f32 %v362, %v427
    %v445 = vmul.f32 %v366, %v427
    %v446 = vmul.f32 %v370, %v427
    %v447 = vmul.f32 %v374, %v427
    %v448 = vmul.f32 %v378, %v427
    %v449 = vmul.f32 %v382, %v427
    %v450 = vmul.f32 %v386, %v427
    %v451 = vmul.f32 %v390, %v427
    %v452 = vmul.f32 %v394, %v427
    %v453 = vmul.f32 %v398, %v427
    %v454 = vmul.f32 %v402, %v427
    %v455 = vmul.f32 %v406, %v427
    %v456 = vmul.f32 %v410, %v427
    %v457 = vmul.f32 %v414, %v427
    %v458 = vmul.f32 %v418, %v427
    %v459 = vmul.f32 %v422, %v427
    %v460 = vadd.f32 %v264, %v428
    %v461 = vadd.f32 %v265, %v429
    %v462 = vadd.f32 %v266, %v430
    %v463 = vadd.f32 %v267, %v431
    %v464 = vadd.f32 %v268, %v432
    %v465 = vadd.f32 %v269, %v433
    %v466 = vadd.f32 %v270, %v434
    %v467 = vadd.f32 %v271, %v435
    %v468 = vadd.f32 %v272, %v436
    %v469 = vadd.f32 %v273, %v437
    %v470 = vadd.f32 %v274, %v438
    %v471 = vadd.f32 %v275, %v439
    %v472 = vadd.f32 %v276, %v440
    %v473 = vadd.f32 %v277, %v441
    %v474 = vadd.f32 %v278, %v442
    %v475 = vadd.f32 %v279, %v443
    %v476 = vadd.f32 %v280, %v444
    %v477 = vadd.f32 %v281, %v445
    %v478 = vadd.f32 %v282, %v446
    %v479 = vadd.f32 %v283, %v447
    %v480 = vadd.f32 %v284, %v448
    %v481 = vadd.f32 %v285, %v449
    %v482 = vadd.f32 %v286, %v450
    %v483 = vadd.f32 %v287, %v451
    %v484 = vadd.f32 %v288, %v452
    %v485 = vadd.f32 %v289, %v453
    %v486 = vadd.f32 %v290, %v454
    %v487 = vadd.f32 %v291, %v455
    %v488 = vadd.f32 %v292, %v456
    %v489 = vadd.f32 %v293, %v457
    %v490 = vadd.f32 %v294, %v458
    %v491 = vadd.f32 %v295, %v459
    %492 = vset.pattern.permute.xlu0 2
    %493 = vperm.xlu0 %492, %v28
    %v494 = vpop.permute.xlu0 %493
    %496 = vset.pattern.permute.xlu0 2
    %497 = vperm.xlu0 %496, %v29
    %v498 = vpop.permute.xlu0 %497
    %500 = vset.pattern.permute.xlu0 2
    %501 = vperm.xlu0 %500, %v30
    %v502 = vpop.permute.xlu0 %501
    %504 = vset.pattern.permute.xlu0 2
    %505 = vperm.xlu0 %504, %v31
    %v506 = vpop.permute.xlu0 %505
    %508 = vset.pattern.permute.xlu0 2
    %509 = vperm.xlu0 %508, %v32
    %v510 = vpop.permute.xlu0 %509
    %512 = vset.pattern.permute.xlu0 2
    %513 = vperm.xlu0 %512, %v33
    %v514 = vpop.permute.xlu0 %513
    %516 = vset.pattern.permute.xlu0 2
    %517 = vperm.xlu0 %516, %v34
    %v518 = vpop.permute.xlu0 %517
    %520 = vset.pattern.permute.xlu0 2
    %521 = vperm.xlu0 %520, %v35
    %v522 = vpop.permute.xlu0 %521
    %524 = vset.pattern.permute.xlu0 2
    %525 = vperm.xlu0 %524, %v36
    %v526 = vpop.permute.xlu0 %525
    %528 = vset.pattern.permute.xlu0 2
    %529 = vperm.xlu0 %528, %v37
    %v530 = vpop.permute.xlu0 %529
    %532 = vset.pattern.permute.xlu0 2
    %533 = vperm.xlu0 %532, %v38
    %v534 = vpop.permute.xlu0 %533
    %536 = vset.pattern.permute.xlu0 2
    %537 = vperm.xlu0 %536, %v39
    %v538 = vpop.permute.xlu0 %537
    %540 = vset.pattern.permute.xlu0 2
    %541 = vperm.xlu0 %540, %v40
    %v542 = vpop.permute.xlu0 %541
    %544 = vset.pattern.permute.xlu0 2
    %545 = vperm.xlu0 %544, %v41
    %v546 = vpop.permute.xlu0 %545
    %548 = vset.pattern.permute.xlu0 2
    %549 = vperm.xlu0 %548, %v42
    %v550 = vpop.permute.xlu0 %549
    %552 = vset.pattern.permute.xlu0 2
    %553 = vperm.xlu0 %552, %v43
    %v554 = vpop.permute.xlu0 %553
    %556 = vset.pattern.permute.xlu0 2
    %557 = vperm.xlu0 %556, %v44
    %v558 = vpop.permute.xlu0 %557
    %560 = vset.pattern.permute.xlu0 2
    %561 = vperm.xlu0 %560, %v45
    %v562 = vpop.permute.xlu0 %561
    %564 = vset.pattern.permute.xlu0 2
    %565 = vperm.xlu0 %564, %v46
    %v566 = vpop.permute.xlu0 %565
    %568 = vset.pattern.permute.xlu0 2
    %569 = vperm.xlu0 %568, %v47
    %v570 = vpop.permute.xlu0 %569
    %572 = vset.pattern.permute.xlu0 2
    %573 = vperm.xlu0 %572, %v48
    %v574 = vpop.permute.xlu0 %573
    %576 = vset.pattern.permute.xlu0 2
    %577 = vperm.xlu0 %576, %v49
    %v578 = vpop.permute.xlu0 %577
    %580 = vset.pattern.permute.xlu0 2
    %581 = vperm.xlu0 %580, %v50
    %v582 = vpop.permute.xlu0 %581
    %584 = vset.pattern.permute.xlu0 2
    %585 = vperm.xlu0 %584, %v51
    %v586 = vpop.permute.xlu0 %585
    %588 = vset.pattern.permute.xlu0 2
    %589 = vperm.xlu0 %588, %v52
    %v590 = vpop.permute.xlu0 %589
    %592 = vset.pattern.permute.xlu0 2
    %593 = vperm.xlu0 %592, %v53
    %v594 = vpop.permute.xlu0 %593
    %596 = vset.pattern.permute.xlu0 2
    %597 = vperm.xlu0 %596, %v54
    %v598 = vpop.permute.xlu0 %597
    %600 = vset.pattern.permute.xlu0 2
    %601 = vperm.xlu0 %600, %v55
    %v602 = vpop.permute.xlu0 %601
    %604 = vset.pattern.permute.xlu0 2
    %605 = vperm.xlu0 %604, %v56
    %v606 = vpop.permute.xlu0 %605
    %608 = vset.pattern.permute.xlu0 2
    %609 = vperm.xlu0 %608, %v57
    %v610 = vpop.permute.xlu0 %609
    %612 = vset.pattern.permute.xlu0 2
    %613 = vperm.xlu0 %612, %v58
    %v614 = vpop.permute.xlu0 %613
    %616 = vset.pattern.permute.xlu0 2
    %617 = vperm.xlu0 %616, %v59
    %v618 = vpop.permute.xlu0 %617
    %v620 = vlaneseq
    %v621 = vshrl.u32 %v620, 7
    %v622 = vsub.s32 2, %v621
    %v623 = vrot.slane %v60, %v622
    %v624 = vmul.f32 %v494, %v623
    %v625 = vmul.f32 %v498, %v623
    %v626 = vmul.f32 %v502, %v623
    %v627 = vmul.f32 %v506, %v623
    %v628 = vmul.f32 %v510, %v623
    %v629 = vmul.f32 %v514, %v623
    %v630 = vmul.f32 %v518, %v623
    %v631 = vmul.f32 %v522, %v623
    %v632 = vmul.f32 %v526, %v623
    %v633 = vmul.f32 %v530, %v623
    %v634 = vmul.f32 %v534, %v623
    %v635 = vmul.f32 %v538, %v623
    %v636 = vmul.f32 %v542, %v623
    %v637 = vmul.f32 %v546, %v623
    %v638 = vmul.f32 %v550, %v623
    %v639 = vmul.f32 %v554, %v623
    %v640 = vmul.f32 %v558, %v623
    %v641 = vmul.f32 %v562, %v623
    %v642 = vmul.f32 %v566, %v623
    %v643 = vmul.f32 %v570, %v623
    %v644 = vmul.f32 %v574, %v623
    %v645 = vmul.f32 %v578, %v623
    %v646 = vmul.f32 %v582, %v623
    %v647 = vmul.f32 %v586, %v623
    %v648 = vmul.f32 %v590, %v623
    %v649 = vmul.f32 %v594, %v623
    %v650 = vmul.f32 %v598, %v623
    %v651 = vmul.f32 %v602, %v623
    %v652 = vmul.f32 %v606, %v623
    %v653 = vmul.f32 %v610, %v623
    %v654 = vmul.f32 %v614, %v623
    %v655 = vmul.f32 %v618, %v623
    %v656 = vadd.f32 %v460, %v624
    %v657 = vadd.f32 %v461, %v625
    %v658 = vadd.f32 %v462, %v626
    %v659 = vadd.f32 %v463, %v627
    %v660 = vadd.f32 %v464, %v628
    %v661 = vadd.f32 %v465, %v629
    %v662 = vadd.f32 %v466, %v630
    %v663 = vadd.f32 %v467, %v631
    %v664 = vadd.f32 %v468, %v632
    %v665 = vadd.f32 %v469, %v633
    %v666 = vadd.f32 %v470, %v634
    %v667 = vadd.f32 %v471, %v635
    %v668 = vadd.f32 %v472, %v636
    %v669 = vadd.f32 %v473, %v637
    %v670 = vadd.f32 %v474, %v638
    %v671 = vadd.f32 %v475, %v639
    %v672 = vadd.f32 %v476, %v640
    %v673 = vadd.f32 %v477, %v641
    %v674 = vadd.f32 %v478, %v642
    %v675 = vadd.f32 %v479, %v643
    %v676 = vadd.f32 %v480, %v644
    %v677 = vadd.f32 %v481, %v645
    %v678 = vadd.f32 %v482, %v646
    %v679 = vadd.f32 %v483, %v647
    %v680 = vadd.f32 %v484, %v648
    %v681 = vadd.f32 %v485, %v649
    %v682 = vadd.f32 %v486, %v650
    %v683 = vadd.f32 %v487, %v651
    %v684 = vadd.f32 %v488, %v652
    %v685 = vadd.f32 %v489, %v653
    %v686 = vadd.f32 %v490, %v654
    %v687 = vadd.f32 %v491, %v655
    %688 = vset.pattern.permute.xlu0 3
    %689 = vperm.xlu0 %688, %v28
    %v690 = vpop.permute.xlu0 %689
    %692 = vset.pattern.permute.xlu0 3
    %693 = vperm.xlu0 %692, %v29
    %v694 = vpop.permute.xlu0 %693
    %696 = vset.pattern.permute.xlu0 3
    %697 = vperm.xlu0 %696, %v30
    %v698 = vpop.permute.xlu0 %697
    %700 = vset.pattern.permute.xlu0 3
    %701 = vperm.xlu0 %700, %v31
    %v702 = vpop.permute.xlu0 %701
    %704 = vset.pattern.permute.xlu0 3
    %705 = vperm.xlu0 %704, %v32
    %v706 = vpop.permute.xlu0 %705
    %708 = vset.pattern.permute.xlu0 3
    %709 = vperm.xlu0 %708, %v33
    %v710 = vpop.permute.xlu0 %709
    %712 = vset.pattern.permute.xlu0 3
    %713 = vperm.xlu0 %712, %v34
    %v714 = vpop.permute.xlu0 %713
    %716 = vset.pattern.permute.xlu0 3
    %717 = vperm.xlu0 %716, %v35
    %v718 = vpop.permute.xlu0 %717
    %720 = vset.pattern.permute.xlu0 3
    %721 = vperm.xlu0 %720, %v36
    %v722 = vpop.permute.xlu0 %721
    %724 = vset.pattern.permute.xlu0 3
    %725 = vperm.xlu0 %724, %v37
    %v726 = vpop.permute.xlu0 %725
    %728 = vset.pattern.permute.xlu0 3
    %729 = vperm.xlu0 %728, %v38
    %v730 = vpop.permute.xlu0 %729
    %732 = vset.pattern.permute.xlu0 3
    %733 = vperm.xlu0 %732, %v39
    %v734 = vpop.permute.xlu0 %733
    %736 = vset.pattern.permute.xlu0 3
    %737 = vperm.xlu0 %736, %v40
    %v738 = vpop.permute.xlu0 %737
    %740 = vset.pattern.permute.xlu0 3
    %741 = vperm.xlu0 %740, %v41
    %v742 = vpop.permute.xlu0 %741
    %744 = vset.pattern.permute.xlu0 3
    %745 = vperm.xlu0 %744, %v42
    %v746 = vpop.permute.xlu0 %745
    %748 = vset.pattern.permute.xlu0 3
    %749 = vperm.xlu0 %748, %v43
    %v750 = vpop.permute.xlu0 %749
    %752 = vset.pattern.permute.xlu0 3
    %753 = vperm.xlu0 %752, %v44
    %v754 = vpop.permute.xlu0 %753
    %756 = vset.pattern.permute.xlu0 3
    %757 = vperm.xlu0 %756, %v45
    %v758 = vpop.permute.xlu0 %757
    %760 = vset.pattern.permute.xlu0 3
    %761 = vperm.xlu0 %760, %v46
    %v762 = vpop.permute.xlu0 %761
    %764 = vset.pattern.permute.xlu0 3
    %765 = vperm.xlu0 %764, %v47
    %v766 = vpop.permute.xlu0 %765
    %768 = vset.pattern.permute.xlu0 3
    %769 = vperm.xlu0 %768, %v48
    %v770 = vpop.permute.xlu0 %769
    %772 = vset.pattern.permute.xlu0 3
    %773 = vperm.xlu0 %772, %v49
    %v774 = vpop.permute.xlu0 %773
    %776 = vset.pattern.permute.xlu0 3
    %777 = vperm.xlu0 %776, %v50
    %v778 = vpop.permute.xlu0 %777
    %780 = vset.pattern.permute.xlu0 3
    %781 = vperm.xlu0 %780, %v51
    %v782 = vpop.permute.xlu0 %781
    %784 = vset.pattern.permute.xlu0 3
    %785 = vperm.xlu0 %784, %v52
    %v786 = vpop.permute.xlu0 %785
    %788 = vset.pattern.permute.xlu0 3
    %789 = vperm.xlu0 %788, %v53
    %v790 = vpop.permute.xlu0 %789
    %792 = vset.pattern.permute.xlu0 3
    %793 = vperm.xlu0 %792, %v54
    %v794 = vpop.permute.xlu0 %793
    %796 = vset.pattern.permute.xlu0 3
    %797 = vperm.xlu0 %796, %v55
    %v798 = vpop.permute.xlu0 %797
    %800 = vset.pattern.permute.xlu0 3
    %801 = vperm.xlu0 %800, %v56
    %v802 = vpop.permute.xlu0 %801
    %804 = vset.pattern.permute.xlu0 3
    %805 = vperm.xlu0 %804, %v57
    %v806 = vpop.permute.xlu0 %805
    %808 = vset.pattern.permute.xlu0 3
    %809 = vperm.xlu0 %808, %v58
    %v810 = vpop.permute.xlu0 %809
    %812 = vset.pattern.permute.xlu0 3
    %813 = vperm.xlu0 %812, %v59
    %v814 = vpop.permute.xlu0 %813
    %v816 = vlaneseq
    %v817 = vshrl.u32 %v816, 7
    %v818 = vsub.s32 3, %v817
    %v819 = vrot.slane %v60, %v818
    %v820 = vmul.f32 %v690, %v819
    %v821 = vmul.f32 %v694, %v819
    %v822 = vmul.f32 %v698, %v819
    %v823 = vmul.f32 %v702, %v819
    %v824 = vmul.f32 %v706, %v819
    %v825 = vmul.f32 %v710, %v819
    %v826 = vmul.f32 %v714, %v819
    %v827 = vmul.f32 %v718, %v819
    %v828 = vmul.f32 %v722, %v819
    %v829 = vmul.f32 %v726, %v819
    %v830 = vmul.f32 %v730, %v819
    %v831 = vmul.f32 %v734, %v819
    %v832 = vmul.f32 %v738, %v819
    %v833 = vmul.f32 %v742, %v819
    %v834 = vmul.f32 %v746, %v819
    %v835 = vmul.f32 %v750, %v819
    %v836 = vmul.f32 %v754, %v819
    %v837 = vmul.f32 %v758, %v819
    %v838 = vmul.f32 %v762, %v819
    %v839 = vmul.f32 %v766, %v819
    %v840 = vmul.f32 %v770, %v819
    %v841 = vmul.f32 %v774, %v819
    %v842 = vmul.f32 %v778, %v819
    %v843 = vmul.f32 %v782, %v819
    %v844 = vmul.f32 %v786, %v819
    %v845 = vmul.f32 %v790, %v819
    %v846 = vmul.f32 %v794, %v819
    %v847 = vmul.f32 %v798, %v819
    %v848 = vmul.f32 %v802, %v819
    %v849 = vmul.f32 %v806, %v819
    %v850 = vmul.f32 %v810, %v819
    %v851 = vmul.f32 %v814, %v819
    %v852 = vadd.f32 %v656, %v820
    %v853 = vadd.f32 %v657, %v821
    %v854 = vadd.f32 %v658, %v822
    %v855 = vadd.f32 %v659, %v823
    %v856 = vadd.f32 %v660, %v824
    %v857 = vadd.f32 %v661, %v825
    %v858 = vadd.f32 %v662, %v826
    %v859 = vadd.f32 %v663, %v827
    %v860 = vadd.f32 %v664, %v828
    %v861 = vadd.f32 %v665, %v829
    %v862 = vadd.f32 %v666, %v830
    %v863 = vadd.f32 %v667, %v831
    %v864 = vadd.f32 %v668, %v832
    %v865 = vadd.f32 %v669, %v833
    %v866 = vadd.f32 %v670, %v834
    %v867 = vadd.f32 %v671, %v835
    %v868 = vadd.f32 %v672, %v836
    %v869 = vadd.f32 %v673, %v837
    %v870 = vadd.f32 %v674, %v838
    %v871 = vadd.f32 %v675, %v839
    %v872 = vadd.f32 %v676, %v840
    %v873 = vadd.f32 %v677, %v841
    %v874 = vadd.f32 %v678, %v842
    %v875 = vadd.f32 %v679, %v843
    %v876 = vadd.f32 %v680, %v844
    %v877 = vadd.f32 %v681, %v845
    %v878 = vadd.f32 %v682, %v846
    %v879 = vadd.f32 %v683, %v847
    %v880 = vadd.f32 %v684, %v848
    %v881 = vadd.f32 %v685, %v849
    %v882 = vadd.f32 %v686, %v850
    %v883 = vadd.f32 %v687, %v851
    %v884 = vmax.f32 %v852, 0.0
    %v885 = vmax.f32 %v853, 0.0
    %v886 = vmax.f32 %v854, 0.0
    %v887 = vmax.f32 %v855, 0.0
    %v888 = vmax.f32 %v856, 0.0
    %v889 = vmax.f32 %v857, 0.0
    %v890 = vmax.f32 %v858, 0.0
    %v891 = vmax.f32 %v859, 0.0
    %v892 = vmax.f32 %v860, 0.0
    %v893 = vmax.f32 %v861, 0.0
    %v894 = vmax.f32 %v862, 0.0
    %v895 = vmax.f32 %v863, 0.0
    %v896 = vmax.f32 %v864, 0.0
    %v897 = vmax.f32 %v865, 0.0
    %v898 = vmax.f32 %v866, 0.0
    %v899 = vmax.f32 %v867, 0.0
    %v900 = vmax.f32 %v868, 0.0
    %v901 = vmax.f32 %v869, 0.0
    %v902 = vmax.f32 %v870, 0.0
    %v903 = vmax.f32 %v871, 0.0
    %v904 = vmax.f32 %v872, 0.0
    %v905 = vmax.f32 %v873, 0.0
    %v906 = vmax.f32 %v874, 0.0
    %v907 = vmax.f32 %v875, 0.0
    %v908 = vmax.f32 %v876, 0.0
    %v909 = vmax.f32 %v877, 0.0
    %v910 = vmax.f32 %v878, 0.0
    %v911 = vmax.f32 %v879, 0.0
    %v912 = vmax.f32 %v880, 0.0
    %v913 = vmax.f32 %v881, 0.0
    %v914 = vmax.f32 %v882, 0.0
    %v915 = vmax.f32 %v883, 0.0
    %v916 = vpack.c.bf16 %v885, %v884
    %v917 = vpack.c.bf16 %v887, %v886
    %v918 = vpack.c.bf16 %v889, %v888
    %v919 = vpack.c.bf16 %v891, %v890
    %v920 = vpack.c.bf16 %v893, %v892
    %v921 = vpack.c.bf16 %v895, %v894
    %v922 = vpack.c.bf16 %v897, %v896
    %v923 = vpack.c.bf16 %v899, %v898
    %v924 = vpack.c.bf16 %v901, %v900
    %v925 = vpack.c.bf16 %v903, %v902
    %v926 = vpack.c.bf16 %v905, %v904
    %v927 = vpack.c.bf16 %v907, %v906
    %v928 = vpack.c.bf16 %v909, %v908
    %v929 = vpack.c.bf16 %v911, %v910
    %v930 = vpack.c.bf16 %v913, %v912
    %v931 = vpack.c.bf16 %v915, %v914
    %v932 = vld [vmem:[%s3] sm:$0xf]
    %v933 = vld [vmem:[%s3 + $0x4] sm:$0xf]
    %v934 = vld [vmem:[%s3 + $0x8] sm:$0xf]
    %v935 = vld [vmem:[%s3 + $0xc] sm:$0xf]
    %v936 = vld [vmem:[%s3 + $0x10] sm:$0xf]
    %v937 = vld [vmem:[%s3 + $0x14] sm:$0xf]
    %v938 = vld [vmem:[%s3 + $0x18] sm:$0xf]
    %v939 = vld [vmem:[%s3 + $0x1c] sm:$0xf]
    %v940 = vld [vmem:[%s3 + $0x20] sm:$0xf]
    %v941 = vld [vmem:[%s3 + $0x24] sm:$0xf]
    %v942 = vld [vmem:[%s3 + $0x28] sm:$0xf]
    %v943 = vld [vmem:[%s3 + $0x2c] sm:$0xf]
    %v944 = vld [vmem:[%s3 + $0x30] sm:$0xf]
    %v945 = vld [vmem:[%s3 + $0x34] sm:$0xf]
    %v946 = vld [vmem:[%s3 + $0x38] sm:$0xf]
    %v947 = vld [vmem:[%s3 + $0x3c] sm:$0xf]
    %v948 = vld [vmem:[%s4] sm:$0x1]
    %v950 = vlaneseq
    %v951 = vshrl.u32 %v950, 7
    %v952 = vsub.s32 0, %v951
    %v953 = vrot.slane %v948, %v952
    %v971 = vunpack.c.l.b16 %v932
    %v972 = vunpack.c.l.b16 %v933
    %v973 = vunpack.c.l.b16 %v934
    %v974 = vunpack.c.l.b16 %v935
    %v975 = vunpack.c.l.b16 %v936
    %v976 = vunpack.c.l.b16 %v937
    %v977 = vunpack.c.l.b16 %v938
    %v978 = vunpack.c.l.b16 %v939
    %v979 = vunpack.c.l.b16 %v940
    %v980 = vunpack.c.l.b16 %v941
    %v981 = vunpack.c.l.b16 %v942
    %v982 = vunpack.c.l.b16 %v943
    %v983 = vunpack.c.l.b16 %v944
    %v984 = vunpack.c.l.b16 %v945
    %v985 = vunpack.c.l.b16 %v946
    %v986 = vunpack.c.l.b16 %v947
    %v987 = vpack.c.b16 %v972, %v971
    %v988 = vpack.c.b16 %v974, %v973
    %v989 = vpack.c.b16 %v976, %v975
    %v990 = vpack.c.b16 %v978, %v977
    %v991 = vpack.c.b16 %v980, %v979
    %v992 = vpack.c.b16 %v982, %v981
    %v993 = vpack.c.b16 %v984, %v983
    %v994 = vpack.c.b16 %v986, %v985
    %1003 = vmatprep.subr.bf16.mxu0 0
    %1004 = vmatpush1.bf16.msra.mxu0 %v994
    %1005 = vmatprep.subr.bf16.mxu0 0
    %1006 = vmatpush1.bf16.msra.mxu0 %v993
    %1007 = vmatprep.subr.bf16.mxu0 0
    %1008 = vmatpush1.bf16.msra.mxu0 %v992
    %1009 = vmatprep.subr.bf16.mxu0 0
    %1010 = vmatpush1.bf16.msra.mxu0 %v991
    %1011 = vmatprep.subr.bf16.mxu0 0
    %1012 = vmatpush1.bf16.msra.mxu0 %v990
    %1013 = vmatprep.subr.bf16.mxu0 0
    %1014 = vmatpush1.bf16.msra.mxu0 %v989
    %1015 = vmatprep.subr.bf16.mxu0 0
    %1016 = vmatpush1.bf16.msra.mxu0 %v988
    %1017 = vmatprep.subr.bf16.mxu0 0
    %1018 = vmatpush1.bf16.msra.mxu0 %v987
    %1019 = vmatprep.subr.bf16.mxu0 0
    %1020 = vmatpush2.bf16.msra.mxu0 0
    %1021 = vmatprep.subr.bf16.mxu0 0
    %1022 = vmatpush2.bf16.msra.mxu0 0
    %1023 = vmatprep.subr.bf16.mxu0 0
    %1024 = vmatpush2.bf16.msra.mxu0 0
    %1025 = vmatprep.subr.bf16.mxu0 0
    %1026 = vmatpush2.bf16.msra.mxu0 0
    %1027 = vmatprep.subr.bf16.mxu0 0
    %1028 = vmatpush2.bf16.msra.mxu0 0
    %1029 = vmatprep.subr.bf16.mxu0 0
    %1030 = vmatpush2.bf16.msra.mxu0 0
    %1031 = vmatprep.subr.bf16.mxu0 0
    %1032 = vmatpush2.bf16.msra.mxu0 0
    %1033 = vmatprep.subr.bf16.mxu0 0
    %1034 = vmatpush2.bf16.msra.mxu0 0
    %1035 = vmatprep.mubr.bf16.mxu0 0
    %1036 = vmatmul.mubr.bf16.gmra.mxu0 %v916
    %v1037 = vpop.f32.mrf.mxu0
    %v1038 = vadd.f32 %v953, %v1037
    %v1039 = vpop.f32.mrf.mxu0
    %v1040 = vpop.f32.mrf.mxu0
    %v1041 = vadd.f32 %v953, %v1040
    %v1042 = vpop.f32.mrf.mxu0
    %1043 = vmatprep.mubr.bf16.mxu0 0
    %1044 = vmatmul.mubr.bf16.gmra.mxu0 %v917
    %v1045 = vpop.f32.mrf.mxu0
    %v1046 = vadd.f32 %v953, %v1045
    %v1047 = vpop.f32.mrf.mxu0
    %v1048 = vpop.f32.mrf.mxu0
    %v1049 = vadd.f32 %v953, %v1048
    %v1050 = vpop.f32.mrf.mxu0
    %1051 = vmatprep.mubr.bf16.mxu0 0
    %1052 = vmatmul.mubr.bf16.gmra.mxu0 %v918
    %v1053 = vpop.f32.mrf.mxu0
    %v1054 = vadd.f32 %v953, %v1053
    %v1055 = vpop.f32.mrf.mxu0
    %v1056 = vpop.f32.mrf.mxu0
    %v1057 = vadd.f32 %v953, %v1056
    %v1058 = vpop.f32.mrf.mxu0
    %1059 = vmatprep.mubr.bf16.mxu0 0
    %1060 = vmatmul.mubr.bf16.gmra.mxu0 %v919
    %v1061 = vpop.f32.mrf.mxu0
    %v1062 = vadd.f32 %v953, %v1061
    %v1063 = vpop.f32.mrf.mxu0
    %v1064 = vpop.f32.mrf.mxu0
    %v1065 = vadd.f32 %v953, %v1064
    %v1066 = vpop.f32.mrf.mxu0
    %1067 = vmatprep.mubr.bf16.mxu0 0
    %1068 = vmatmul.mubr.bf16.gmra.mxu0 %v920
    %v1069 = vpop.f32.mrf.mxu0
    %v1070 = vadd.f32 %v953, %v1069
    %v1071 = vpop.f32.mrf.mxu0
    %v1072 = vpop.f32.mrf.mxu0
    %v1073 = vadd.f32 %v953, %v1072
    %v1074 = vpop.f32.mrf.mxu0
    %1075 = vmatprep.mubr.bf16.mxu0 0
    %1076 = vmatmul.mubr.bf16.gmra.mxu0 %v921
    %v1077 = vpop.f32.mrf.mxu0
    %v1078 = vadd.f32 %v953, %v1077
    %v1079 = vpop.f32.mrf.mxu0
    %v1080 = vpop.f32.mrf.mxu0
    %v1081 = vadd.f32 %v953, %v1080
    %v1082 = vpop.f32.mrf.mxu0
    %1083 = vmatprep.mubr.bf16.mxu0 0
    %1084 = vmatmul.mubr.bf16.gmra.mxu0 %v922
    %v1085 = vpop.f32.mrf.mxu0
    %v1086 = vadd.f32 %v953, %v1085
    %v1087 = vpop.f32.mrf.mxu0
    %v1088 = vpop.f32.mrf.mxu0
    %v1089 = vadd.f32 %v953, %v1088
    %v1090 = vpop.f32.mrf.mxu0
    %1091 = vmatprep.mubr.bf16.mxu0 0
    %1092 = vmatmul.mubr.bf16.gmra.mxu0 %v923
    %v1093 = vpop.f32.mrf.mxu0
    %v1094 = vadd.f32 %v953, %v1093
    %v1095 = vpop.f32.mrf.mxu0
    %v1096 = vpop.f32.mrf.mxu0
    %v1097 = vadd.f32 %v953, %v1096
    %v1098 = vpop.f32.mrf.mxu0
    %1099 = vmatprep.mubr.bf16.mxu0 0
    %1100 = vmatmul.mubr.bf16.gmra.mxu0 %v924
    %v1101 = vpop.f32.mrf.mxu0
    %v1102 = vadd.f32 %v953, %v1101
    %v1103 = vpop.f32.mrf.mxu0
    %v1104 = vpop.f32.mrf.mxu0
    %v1105 = vadd.f32 %v953, %v1104
    %v1106 = vpop.f32.mrf.mxu0
    %1107 = vmatprep.mubr.bf16.mxu0 0
    %1108 = vmatmul.mubr.bf16.gmra.mxu0 %v925
    %v1109 = vpop.f32.mrf.mxu0
    %v1110 = vadd.f32 %v953, %v1109
    %v1111 = vpop.f32.mrf.mxu0
    %v1112 = vpop.f32.mrf.mxu0
    %v1113 = vadd.f32 %v953, %v1112
    %v1114 = vpop.f32.mrf.mxu0
    %1115 = vmatprep.mubr.bf16.mxu0 0
    %1116 = vmatmul.mubr.bf16.gmra.mxu0 %v926
    %v1117 = vpop.f32.mrf.mxu0
    %v1118 = vadd.f32 %v953, %v1117
    %v1119 = vpop.f32.mrf.mxu0
    %v1120 = vpop.f32.mrf.mxu0
    %v1121 = vadd.f32 %v953, %v1120
    %v1122 = vpop.f32.mrf.mxu0
    %1123 = vmatprep.mubr.bf16.mxu0 0
    %1124 = vmatmul.mubr.bf16.gmra.mxu0 %v927
    %v1125 = vpop.f32.mrf.mxu0
    %v1126 = vadd.f32 %v953, %v1125
    %v1127 = vpop.f32.mrf.mxu0
    %v1128 = vpop.f32.mrf.mxu0
    %v1129 = vadd.f32 %v953, %v1128
    %v1130 = vpop.f32.mrf.mxu0
    %1131 = vmatprep.mubr.bf16.mxu0 0
    %1132 = vmatmul.mubr.bf16.gmra.mxu0 %v928
    %v1133 = vpop.f32.mrf.mxu0
    %v1134 = vadd.f32 %v953, %v1133
    %v1135 = vpop.f32.mrf.mxu0
    %v1136 = vpop.f32.mrf.mxu0
    %v1137 = vadd.f32 %v953, %v1136
    %v1138 = vpop.f32.mrf.mxu0
    %1139 = vmatprep.mubr.bf16.mxu0 0
    %1140 = vmatmul.mubr.bf16.gmra.mxu0 %v929
    %v1141 = vpop.f32.mrf.mxu0
    %v1142 = vadd.f32 %v953, %v1141
    %v1143 = vpop.f32.mrf.mxu0
    %v1144 = vpop.f32.mrf.mxu0
    %v1145 = vadd.f32 %v953, %v1144
    %v1146 = vpop.f32.mrf.mxu0
    %1147 = vmatprep.mubr.bf16.mxu0 0
    %1148 = vmatmul.mubr.bf16.gmra.mxu0 %v930
    %v1149 = vpop.f32.mrf.mxu0
    %v1150 = vadd.f32 %v953, %v1149
    %v1151 = vpop.f32.mrf.mxu0
    %v1152 = vpop.f32.mrf.mxu0
    %v1153 = vadd.f32 %v953, %v1152
    %v1154 = vpop.f32.mrf.mxu0
    %1155 = vmatprep.mubr.bf16.mxu0 0
    %1156 = vmatmul.mubr.bf16.gmra.mxu0 %v931
    %v1157 = vpop.f32.mrf.mxu0
    %v1158 = vadd.f32 %v953, %v1157
    %v1159 = vpop.f32.mrf.mxu0
    %v1160 = vpop.f32.mrf.mxu0
    %v1161 = vadd.f32 %v953, %v1160
    %v1162 = vpop.f32.mrf.mxu0
    %1163 = vdwg.mxu0
    %v1164 = vmax.f32 %v1038, 0.0
    %v1165 = vmax.f32 %v1041, 0.0
    %v1166 = vmax.f32 %v1046, 0.0
    %v1167 = vmax.f32 %v1049, 0.0
    %v1168 = vmax.f32 %v1054, 0.0
    %v1169 = vmax.f32 %v1057, 0.0
    %v1170 = vmax.f32 %v1062, 0.0
    %v1171 = vmax.f32 %v1065, 0.0
    %v1172 = vmax.f32 %v1070, 0.0
    %v1173 = vmax.f32 %v1073, 0.0
    %v1174 = vmax.f32 %v1078, 0.0
    %v1175 = vmax.f32 %v1081, 0.0
    %v1176 = vmax.f32 %v1086, 0.0
    %v1177 = vmax.f32 %v1089, 0.0
    %v1178 = vmax.f32 %v1094, 0.0
    %v1179 = vmax.f32 %v1097, 0.0
    %v1180 = vmax.f32 %v1102, 0.0
    %v1181 = vmax.f32 %v1105, 0.0
    %v1182 = vmax.f32 %v1110, 0.0
    %v1183 = vmax.f32 %v1113, 0.0
    %v1184 = vmax.f32 %v1118, 0.0
    %v1185 = vmax.f32 %v1121, 0.0
    %v1186 = vmax.f32 %v1126, 0.0
    %v1187 = vmax.f32 %v1129, 0.0
    %v1188 = vmax.f32 %v1134, 0.0
    %v1189 = vmax.f32 %v1137, 0.0
    %v1190 = vmax.f32 %v1142, 0.0
    %v1191 = vmax.f32 %v1145, 0.0
    %v1192 = vmax.f32 %v1150, 0.0
    %v1193 = vmax.f32 %v1153, 0.0
    %v1194 = vmax.f32 %v1158, 0.0
    %v1195 = vmax.f32 %v1161, 0.0
    %v1196 = vpack.c.bf16 %v1165, %v1164
    %v1197 = vpack.c.bf16 %v1167, %v1166
    %v1198 = vpack.c.bf16 %v1169, %v1168
    %v1199 = vpack.c.bf16 %v1171, %v1170
    %v1200 = vpack.c.bf16 %v1173, %v1172
    %v1201 = vpack.c.bf16 %v1175, %v1174
    %v1202 = vpack.c.bf16 %v1177, %v1176
    %v1203 = vpack.c.bf16 %v1179, %v1178
    %v1204 = vpack.c.bf16 %v1181, %v1180
    %v1205 = vpack.c.bf16 %v1183, %v1182
    %v1206 = vpack.c.bf16 %v1185, %v1184
    %v1207 = vpack.c.bf16 %v1187, %v1186
    %v1208 = vpack.c.bf16 %v1189, %v1188
    %v1209 = vpack.c.bf16 %v1191, %v1190
    %v1210 = vpack.c.bf16 %v1193, %v1192
    %v1211 = vpack.c.bf16 %v1195, %v1194
    %v1212 = vld [vmem:[%s5] sm:$0xf]
    %v1213 = vld [vmem:[%s5 + $0x4] sm:$0xf]
    %v1214 = vld [vmem:[%s5 + $0x8] sm:$0xf]
    %v1215 = vld [vmem:[%s5 + $0xc] sm:$0xf]
    %v1216 = vld [vmem:[%s5 + $0x10] sm:$0xf]
    %v1217 = vld [vmem:[%s5 + $0x14] sm:$0xf]
    %v1218 = vld [vmem:[%s5 + $0x18] sm:$0xf]
    %v1219 = vld [vmem:[%s5 + $0x1c] sm:$0xf]
    %v1220 = vld [vmem:[%s5 + $0x20] sm:$0xf]
    %v1221 = vld [vmem:[%s5 + $0x24] sm:$0xf]
    %v1222 = vld [vmem:[%s5 + $0x28] sm:$0xf]
    %v1223 = vld [vmem:[%s5 + $0x2c] sm:$0xf]
    %v1224 = vld [vmem:[%s5 + $0x30] sm:$0xf]
    %v1225 = vld [vmem:[%s5 + $0x34] sm:$0xf]
    %v1226 = vld [vmem:[%s5 + $0x38] sm:$0xf]
    %v1227 = vld [vmem:[%s5 + $0x3c] sm:$0xf]
    %v1228 = vld [vmem:[%s6] sm:$0x1]
    %v1230 = vlaneseq
    %v1231 = vshrl.u32 %v1230, 7
    %v1232 = vsub.s32 0, %v1231
    %v1233 = vrot.slane %v1228, %v1232
    %v1251 = vunpack.c.l.b16 %v1212
    %v1252 = vunpack.c.l.b16 %v1213
    %v1253 = vunpack.c.l.b16 %v1214
    %v1254 = vunpack.c.l.b16 %v1215
    %v1255 = vunpack.c.l.b16 %v1216
    %v1256 = vunpack.c.l.b16 %v1217
    %v1257 = vunpack.c.l.b16 %v1218
    %v1258 = vunpack.c.l.b16 %v1219
    %v1259 = vunpack.c.l.b16 %v1220
    %v1260 = vunpack.c.l.b16 %v1221
    %v1261 = vunpack.c.l.b16 %v1222
    %v1262 = vunpack.c.l.b16 %v1223
    %v1263 = vunpack.c.l.b16 %v1224
    %v1264 = vunpack.c.l.b16 %v1225
    %v1265 = vunpack.c.l.b16 %v1226
    %v1266 = vunpack.c.l.b16 %v1227
    %v1267 = vpack.c.b16 %v1252, %v1251
    %v1268 = vpack.c.b16 %v1254, %v1253
    %v1269 = vpack.c.b16 %v1256, %v1255
    %v1270 = vpack.c.b16 %v1258, %v1257
    %v1271 = vpack.c.b16 %v1260, %v1259
    %v1272 = vpack.c.b16 %v1262, %v1261
    %v1273 = vpack.c.b16 %v1264, %v1263
    %v1274 = vpack.c.b16 %v1266, %v1265
    %1283 = vmatprep.subr.bf16.mxu0 0
    %1284 = vmatpush1.bf16.msra.mxu0 %v1274
    %1285 = vmatprep.subr.bf16.mxu0 0
    %1286 = vmatpush1.bf16.msra.mxu0 %v1273
    %1287 = vmatprep.subr.bf16.mxu0 0
    %1288 = vmatpush1.bf16.msra.mxu0 %v1272
    %1289 = vmatprep.subr.bf16.mxu0 0
    %1290 = vmatpush1.bf16.msra.mxu0 %v1271
    %1291 = vmatprep.subr.bf16.mxu0 0
    %1292 = vmatpush1.bf16.msra.mxu0 %v1270
    %1293 = vmatprep.subr.bf16.mxu0 0
    %1294 = vmatpush1.bf16.msra.mxu0 %v1269
    %1295 = vmatprep.subr.bf16.mxu0 0
    %1296 = vmatpush1.bf16.msra.mxu0 %v1268
    %1297 = vmatprep.subr.bf16.mxu0 0
    %1298 = vmatpush1.bf16.msra.mxu0 %v1267
    %1299 = vmatprep.subr.bf16.mxu0 0
    %1300 = vmatpush2.bf16.msra.mxu0 0
    %1301 = vmatprep.subr.bf16.mxu0 0
    %1302 = vmatpush2.bf16.msra.mxu0 0
    %1303 = vmatprep.subr.bf16.mxu0 0
    %1304 = vmatpush2.bf16.msra.mxu0 0
    %1305 = vmatprep.subr.bf16.mxu0 0
    %1306 = vmatpush2.bf16.msra.mxu0 0
    %1307 = vmatprep.subr.bf16.mxu0 0
    %1308 = vmatpush2.bf16.msra.mxu0 0
    %1309 = vmatprep.subr.bf16.mxu0 0
    %1310 = vmatpush2.bf16.msra.mxu0 0
    %1311 = vmatprep.subr.bf16.mxu0 0
    %1312 = vmatpush2.bf16.msra.mxu0 0
    %1313 = vmatprep.subr.bf16.mxu0 0
    %1314 = vmatpush2.bf16.msra.mxu0 0
    %1315 = vmatprep.mubr.bf16.mxu0 0
    %1316 = vmatmul.mubr.bf16.gmra.mxu0 %v1196
    %v1317 = vpop.f32.mrf.mxu0
    %v1318 = vadd.f32 %v1233, %v1317
    %v1319 = vpop.f32.mrf.mxu0
    %v1320 = vpop.f32.mrf.mxu0
    %v1321 = vadd.f32 %v1233, %v1320
    %v1322 = vpop.f32.mrf.mxu0
    %1323 = vmatprep.mubr.bf16.mxu0 0
    %1324 = vmatmul.mubr.bf16.gmra.mxu0 %v1197
    %v1325 = vpop.f32.mrf.mxu0
    %v1326 = vadd.f32 %v1233, %v1325
    %v1327 = vpop.f32.mrf.mxu0
    %v1328 = vpop.f32.mrf.mxu0
    %v1329 = vadd.f32 %v1233, %v1328
    %v1330 = vpop.f32.mrf.mxu0
    %1331 = vmatprep.mubr.bf16.mxu0 0
    %1332 = vmatmul.mubr.bf16.gmra.mxu0 %v1198
    %v1333 = vpop.f32.mrf.mxu0
    %v1334 = vadd.f32 %v1233, %v1333
    %v1335 = vpop.f32.mrf.mxu0
    %v1336 = vpop.f32.mrf.mxu0
    %v1337 = vadd.f32 %v1233, %v1336
    %v1338 = vpop.f32.mrf.mxu0
    %1339 = vmatprep.mubr.bf16.mxu0 0
    %1340 = vmatmul.mubr.bf16.gmra.mxu0 %v1199
    %v1341 = vpop.f32.mrf.mxu0
    %v1342 = vadd.f32 %v1233, %v1341
    %v1343 = vpop.f32.mrf.mxu0
    %v1344 = vpop.f32.mrf.mxu0
    %v1345 = vadd.f32 %v1233, %v1344
    %v1346 = vpop.f32.mrf.mxu0
    %1347 = vmatprep.mubr.bf16.mxu0 0
    %1348 = vmatmul.mubr.bf16.gmra.mxu0 %v1200
    %v1349 = vpop.f32.mrf.mxu0
    %v1350 = vadd.f32 %v1233, %v1349
    %v1351 = vpop.f32.mrf.mxu0
    %v1352 = vpop.f32.mrf.mxu0
    %v1353 = vadd.f32 %v1233, %v1352
    %v1354 = vpop.f32.mrf.mxu0
    %1355 = vmatprep.mubr.bf16.mxu0 0
    %1356 = vmatmul.mubr.bf16.gmra.mxu0 %v1201
    %v1357 = vpop.f32.mrf.mxu0
    %v1358 = vadd.f32 %v1233, %v1357
    %v1359 = vpop.f32.mrf.mxu0
    %v1360 = vpop.f32.mrf.mxu0
    %v1361 = vadd.f32 %v1233, %v1360
    %v1362 = vpop.f32.mrf.mxu0
    %1363 = vmatprep.mubr.bf16.mxu0 0
    %1364 = vmatmul.mubr.bf16.gmra.mxu0 %v1202
    %v1365 = vpop.f32.mrf.mxu0
    %v1366 = vadd.f32 %v1233, %v1365
    %v1367 = vpop.f32.mrf.mxu0
    %v1368 = vpop.f32.mrf.mxu0
    %v1369 = vadd.f32 %v1233, %v1368
    %v1370 = vpop.f32.mrf.mxu0
    %1371 = vmatprep.mubr.bf16.mxu0 0
    %1372 = vmatmul.mubr.bf16.gmra.mxu0 %v1203
    %v1373 = vpop.f32.mrf.mxu0
    %v1374 = vadd.f32 %v1233, %v1373
    %v1375 = vpop.f32.mrf.mxu0
    %v1376 = vpop.f32.mrf.mxu0
    %v1377 = vadd.f32 %v1233, %v1376
    %v1378 = vpop.f32.mrf.mxu0
    %1379 = vmatprep.mubr.bf16.mxu0 0
    %1380 = vmatmul.mubr.bf16.gmra.mxu0 %v1204
    %v1381 = vpop.f32.mrf.mxu0
    %v1382 = vadd.f32 %v1233, %v1381
    %v1383 = vpop.f32.mrf.mxu0
    %v1384 = vpop.f32.mrf.mxu0
    %v1385 = vadd.f32 %v1233, %v1384
    %v1386 = vpop.f32.mrf.mxu0
    %1387 = vmatprep.mubr.bf16.mxu0 0
    %1388 = vmatmul.mubr.bf16.gmra.mxu0 %v1205
    %v1389 = vpop.f32.mrf.mxu0
    %v1390 = vadd.f32 %v1233, %v1389
    %v1391 = vpop.f32.mrf.mxu0
    %v1392 = vpop.f32.mrf.mxu0
    %v1393 = vadd.f32 %v1233, %v1392
    %v1394 = vpop.f32.mrf.mxu0
    %1395 = vmatprep.mubr.bf16.mxu0 0
    %1396 = vmatmul.mubr.bf16.gmra.mxu0 %v1206
    %v1397 = vpop.f32.mrf.mxu0
    %v1398 = vadd.f32 %v1233, %v1397
    %v1399 = vpop.f32.mrf.mxu0
    %v1400 = vpop.f32.mrf.mxu0
    %v1401 = vadd.f32 %v1233, %v1400
    %v1402 = vpop.f32.mrf.mxu0
    %1403 = vmatprep.mubr.bf16.mxu0 0
    %1404 = vmatmul.mubr.bf16.gmra.mxu0 %v1207
    %v1405 = vpop.f32.mrf.mxu0
    %v1406 = vadd.f32 %v1233, %v1405
    %v1407 = vpop.f32.mrf.mxu0
    %v1408 = vpop.f32.mrf.mxu0
    %v1409 = vadd.f32 %v1233, %v1408
    %v1410 = vpop.f32.mrf.mxu0
    %1411 = vmatprep.mubr.bf16.mxu0 0
    %1412 = vmatmul.mubr.bf16.gmra.mxu0 %v1208
    %v1413 = vpop.f32.mrf.mxu0
    %v1414 = vadd.f32 %v1233, %v1413
    %v1415 = vpop.f32.mrf.mxu0
    %v1416 = vpop.f32.mrf.mxu0
    %v1417 = vadd.f32 %v1233, %v1416
    %v1418 = vpop.f32.mrf.mxu0
    %1419 = vmatprep.mubr.bf16.mxu0 0
    %1420 = vmatmul.mubr.bf16.gmra.mxu0 %v1209
    %v1421 = vpop.f32.mrf.mxu0
    %v1422 = vadd.f32 %v1233, %v1421
    %v1423 = vpop.f32.mrf.mxu0
    %v1424 = vpop.f32.mrf.mxu0
    %v1425 = vadd.f32 %v1233, %v1424
    %v1426 = vpop.f32.mrf.mxu0
    %1427 = vmatprep.mubr.bf16.mxu0 0
    %1428 = vmatmul.mubr.bf16.gmra.mxu0 %v1210
    %v1429 = vpop.f32.mrf.mxu0
    %v1430 = vadd.f32 %v1233, %v1429
    %v1431 = vpop.f32.mrf.mxu0
    %v1432 = vpop.f32.mrf.mxu0
    %v1433 = vadd.f32 %v1233, %v1432
    %v1434 = vpop.f32.mrf.mxu0
    %1435 = vmatprep.mubr.bf16.mxu0 0
    %1436 = vmatmul.mubr.bf16.gmra.mxu0 %v1211
    %v1437 = vpop.f32.mrf.mxu0
    %v1438 = vadd.f32 %v1233, %v1437
    %v1439 = vpop.f32.mrf.mxu0
    %v1440 = vpop.f32.mrf.mxu0
    %v1441 = vadd.f32 %v1233, %v1440
    %v1442 = vpop.f32.mrf.mxu0
    %1443 = vdwg.mxu0
    %v1444 = vpack.c.bf16 %v1321, %v1318
    %v1445 = vpack.c.bf16 %v1329, %v1326
    %v1446 = vpack.c.bf16 %v1337, %v1334
    %v1447 = vpack.c.bf16 %v1345, %v1342
    %v1448 = vpack.c.bf16 %v1353, %v1350
    %v1449 = vpack.c.bf16 %v1361, %v1358
    %v1450 = vpack.c.bf16 %v1369, %v1366
    %v1451 = vpack.c.bf16 %v1377, %v1374
    %v1452 = vpack.c.bf16 %v1385, %v1382
    %v1453 = vpack.c.bf16 %v1393, %v1390
    %v1454 = vpack.c.bf16 %v1401, %v1398
    %v1455 = vpack.c.bf16 %v1409, %v1406
    %v1456 = vpack.c.bf16 %v1417, %v1414
    %v1457 = vpack.c.bf16 %v1425, %v1422
    %v1458 = vpack.c.bf16 %v1433, %v1430
    %v1459 = vpack.c.bf16 %v1441, %v1438
    %v1476 = vunpack.c.l.b16 %v1444
    %v1477 = vunpack.c.h.b16 %v1444
    %v1478 = vunpack.c.l.b16 %v1445
    %v1479 = vunpack.c.h.b16 %v1445
    %v1480 = vunpack.c.l.b16 %v1446
    %v1481 = vunpack.c.h.b16 %v1446
    %v1482 = vunpack.c.l.b16 %v1447
    %v1483 = vunpack.c.h.b16 %v1447
    %v1484 = vunpack.c.l.b16 %v1448
    %v1485 = vunpack.c.h.b16 %v1448
    %v1486 = vunpack.c.l.b16 %v1449
    %v1487 = vunpack.c.h.b16 %v1449
    %v1488 = vunpack.c.l.b16 %v1450
    %v1489 = vunpack.c.h.b16 %v1450
    %v1490 = vunpack.c.l.b16 %v1451
    %v1491 = vunpack.c.h.b16 %v1451
    %v1492 = vunpack.c.l.b16 %v1452
    %v1493 = vunpack.c.h.b16 %v1452
    %v1494 = vunpack.c.l.b16 %v1453
    %v1495 = vunpack.c.h.b16 %v1453
    %v1496 = vunpack.c.l.b16 %v1454
    %v1497 = vunpack.c.h.b16 %v1454
    %v1498 = vunpack.c.l.b16 %v1455
    %v1499 = vunpack.c.h.b16 %v1455
    %v1500 = vunpack.c.l.b16 %v1456
    %v1501 = vunpack.c.h.b16 %v1456
    %v1502 = vunpack.c.l.b16 %v1457
    %v1503 = vunpack.c.h.b16 %v1457
    %v1504 = vunpack.c.l.b16 %v1458
    %v1505 = vunpack.c.h.b16 %v1458
    %v1506 = vunpack.c.l.b16 %v1459
    %v1507 = vunpack.c.h.b16 %v1459
    %v1508 = vpack.c.b16 %v1476, %v1476
    %v1509 = vpack.c.b16 %v1477, %v1477
    %v1510 = vpack.c.b16 %v1478, %v1478
    %v1511 = vpack.c.b16 %v1479, %v1479
    %v1512 = vpack.c.b16 %v1480, %v1480
    %v1513 = vpack.c.b16 %v1481, %v1481
    %v1514 = vpack.c.b16 %v1482, %v1482
    %v1515 = vpack.c.b16 %v1483, %v1483
    %v1516 = vpack.c.b16 %v1484, %v1484
    %v1517 = vpack.c.b16 %v1485, %v1485
    %v1518 = vpack.c.b16 %v1486, %v1486
    %v1519 = vpack.c.b16 %v1487, %v1487
    %v1520 = vpack.c.b16 %v1488, %v1488
    %v1521 = vpack.c.b16 %v1489, %v1489
    %v1522 = vpack.c.b16 %v1490, %v1490
    %v1523 = vpack.c.b16 %v1491, %v1491
    %v1524 = vpack.c.b16 %v1492, %v1492
    %v1525 = vpack.c.b16 %v1493, %v1493
    %v1526 = vpack.c.b16 %v1494, %v1494
    %v1527 = vpack.c.b16 %v1495, %v1495
    %v1528 = vpack.c.b16 %v1496, %v1496
    %v1529 = vpack.c.b16 %v1497, %v1497
    %v1530 = vpack.c.b16 %v1498, %v1498
    %v1531 = vpack.c.b16 %v1499, %v1499
    %v1532 = vpack.c.b16 %v1500, %v1500
    %v1533 = vpack.c.b16 %v1501, %v1501
    %v1534 = vpack.c.b16 %v1502, %v1502
    %v1535 = vpack.c.b16 %v1503, %v1503
    %v1536 = vpack.c.b16 %v1504, %v1504
    %v1537 = vpack.c.b16 %v1505, %v1505
    %v1538 = vpack.c.b16 %v1506, %v1506
    %v1539 = vpack.c.b16 %v1507, %v1507
    %1572 = vst [vmem:[#allocation2] sm:$0xf] %v1508
    %1573 = vst [vmem:[#allocation2 + $0x4] sm:$0xf] %v1509
    %1574 = vst [vmem:[#allocation2 + $0x8] sm:$0xf] %v1510
    %1575 = vst [vmem:[#allocation2 + $0xc] sm:$0xf] %v1511
    %1576 = vst [vmem:[#allocation2 + $0x10] sm:$0xf] %v1512
    %1577 = vst [vmem:[#allocation2 + $0x14] sm:$0xf] %v1513
    %1578 = vst [vmem:[#allocation2 + $0x18] sm:$0xf] %v1514
    %1579 = vst [vmem:[#allocation2 + $0x1c] sm:$0xf] %v1515
    %1580 = vst [vmem:[#allocation2 + $0x20] sm:$0xf] %v1516
    %1581 = vst [vmem:[#allocation2 + $0x24] sm:$0xf] %v1517
    %1582 = vst [vmem:[#allocation2 + $0x28] sm:$0xf] %v1518
    %1583 = vst [vmem:[#allocation2 + $0x2c] sm:$0xf] %v1519
    %1584 = vst [vmem:[#allocation2 + $0x30] sm:$0xf] %v1520
    %1585 = vst [vmem:[#allocation2 + $0x34] sm:$0xf] %v1521
    %1586 = vst [vmem:[#allocation2 + $0x38] sm:$0xf] %v1522
    %1587 = vst [vmem:[#allocation2 + $0x3c] sm:$0xf] %v1523
    %1588 = vst [vmem:[#allocation2 + $0x40] sm:$0xf] %v1524
    %1589 = vst [vmem:[#allocation2 + $0x44] sm:$0xf] %v1525
    %1590 = vst [vmem:[#allocation2 + $0x48] sm:$0xf] %v1526
    %1591 = vst [vmem:[#allocation2 + $0x4c] sm:$0xf] %v1527
    %1592 = vst [vmem:[#allocation2 + $0x50] sm:$0xf] %v1528
    %1593 = vst [vmem:[#allocation2 + $0x54] sm:$0xf] %v1529
    %1594 = vst [vmem:[#allocation2 + $0x58] sm:$0xf] %v1530
    %1595 = vst [vmem:[#allocation2 + $0x5c] sm:$0xf] %v1531
    %1596 = vst [vmem:[#allocation2 + $0x60] sm:$0xf] %v1532
    %1597 = vst [vmem:[#allocation2 + $0x64] sm:$0xf] %v1533
    %1598 = vst [vmem:[#allocation2 + $0x68] sm:$0xf] %v1534
    %1599 = vst [vmem:[#allocation2 + $0x6c] sm:$0xf] %v1535
    %1600 = vst [vmem:[#allocation2 + $0x70] sm:$0xf] %v1536
    %1601 = vst [vmem:[#allocation2 + $0x74] sm:$0xf] %v1537
    %1602 = vst [vmem:[#allocation2 + $0x78] sm:$0xf] %v1538
    %1603 = vst [vmem:[#allocation2 + $0x7c] sm:$0xf] %v1539
    // Predicated region
    $region30: #{tpu_custom_call.1} parent=1 // pred_check
      _
    $region31: #{tpu_custom_call.1} parent=1 // pred_check_branch
      %1605 = sbr.rel (0) target = $region33
    $region32: #{tpu_custom_call.1} parent=1 // pred_region
      %s1607 = ssub.s32 2048, 2048
      %1608 = vsyncadd [#allocation3], %s1607
      %s1609 = sshll.u32 [#allocation2], 4
      %s1610 = int_to_ptr.vmem [resolvable:$true] %s1609
      %1615 = dma.vmem_to_hbm [thread:$0]  %s1610, 2048, %s7, [#allocation3], 64, 64, 4
    $region33: #{tpu_custom_call.1} parent=1 // pred_fallthru
      _
    // Predicated region
    $region34: #{tpu_custom_call.1} parent=1 // pred_check
      _
    $region35: #{tpu_custom_call.1} parent=1 // pred_check_branch
      %1617 = sbr.rel (0) target = $region37
    $region36: #{tpu_custom_call.1} parent=1 // pred_region
      %1618 = dma.done [#allocation3], 2048
    $region37: #{tpu_custom_call.1} parent=1 // pred_fallthru
      _
    %1619 = vsyncpa [#allocation3], 1

</llo_original>
